<compile_context>
chip_gen: v6e
topology: v6e:2x2x1
jax: 0.10.0
libtpu: 0.0.40
codegen_flags: <defaults>
</compile_context>

<pallas_src>
import functools

import jax
import jax.numpy as jnp
from jax.experimental import pallas as pl
from jax.experimental.pallas import tpu as pltpu


def _round_up(x, m):
    return ((x + m - 1) // m) * m


def _bow_kernel(ids_ref, mask_ref, table_ref, w1_ref, b1_ref, wsm_ref, bsm_ref,
                out_ref, counts_acc, len_acc, *, oh_dtype, seq_len, mask_seq_tail):
    # ids_ref:   (TB, TS) int      mask_ref: (TB, TS) int/float
    # table_ref: (V, E)            w1_ref:   (E, M)       b1_ref:  (1, M)  f32
    # wsm_ref:   (M, Lp)           bsm_ref:  (1, Lp) f32  out_ref: (TB, Lp) f32
    # counts_acc:(TB, V) f32       len_acc:  (TB, 1) f32
    s = pl.program_id(1)

    @pl.when(s == 0)
    def _init():
        counts_acc[...] = jnp.zeros_like(counts_acc)
        len_acc[...] = jnp.zeros_like(len_acc)

    ids = ids_ref[...]                                    # (TB, TS)
    m = mask_ref[...].astype(jnp.float32)                 # (TB, TS)
    TB, TS = ids.shape
    V = table_ref.shape[0]

    if mask_seq_tail:
        # Ragged last S tile: zero out columns that lie beyond the real sequence.
        col = jax.lax.broadcasted_iota(jnp.int32, (TB, TS), 1) + s * TS
        m = jnp.where(col < seq_len, m, 0.0)

    len_acc[...] += jnp.sum(m, axis=1, keepdims=True)

    # Fused bag-of-words "gather": mask-weighted one-hot counts over the vocab.
    # Single select against a non-materialized (1,1,V) iota; f32 accumulation.
    vocab_iota = jax.lax.broadcasted_iota(jnp.int32, (1, 1, V), 2)
    sel = m.astype(oh_dtype)                               # (TB, TS)
    weighted = jnp.where(ids[:, :, None] == vocab_iota, sel[:, :, None],
                         jnp.zeros((), oh_dtype))          # (TB, TS, V)
    counts_acc[...] += jnp.sum(weighted, axis=1, dtype=jnp.float32)   # (TB, V)

    @pl.when(s == pl.num_programs(1) - 1)
    def _finish():
        # masked mean (lengths clamped so padded / fully-masked rows stay finite)
        inv_len = pl.reciprocal(jnp.maximum(len_acc[...], 1.0), approx=True)
        # masked sum over time = counts @ table   (MXU, f32 accumulate)
        summed = jnp.dot(counts_acc[...].astype(table_ref.dtype), table_ref[...],
                         preferred_element_type=jnp.float32)           # (TB, E)
        avg = summed * inv_len
        # classifier: Linear -> ReLU -> Dropout(identity at eval) -> Linear
        h = jnp.dot(avg.astype(w1_ref.dtype), w1_ref[...],
                    preferred_element_type=jnp.float32) + b1_ref[...]  # (TB, M)
        h = jnp.maximum(h, 0.0)
        logits = jnp.dot(h.astype(wsm_ref.dtype), wsm_ref[...],
                         preferred_element_type=jnp.float32) + bsm_ref[...]
        out_ref[...] = logits.astype(out_ref.dtype)


def bag_of_words_forward(input_ids, attention_mask, params):
    """Returns (loss=None, logits) like the PyTorch module with labels=None."""
    table = params["embd"]                     # (V, E)
    w1, b1 = params["w1"], params["b1"]        # (E, M), (M,)
    wsm, bsm = params["wsm"], params["bsm"]    # (M, L), (L,)

    B, S = input_ids.shape
    V, E = table.shape
    M = w1.shape[1]
    L = wsm.shape[1]

    LANE, SUB = 128, 8

    # --- chip-aware knobs --------------------------------------------------
    try:
        kind = jax.devices()[0].device_kind.lower()
    except Exception:
        kind = ""
    is_v7 = ("v7" in kind) or ("tpu7" in kind)
    has_bf16_vpu = is_v7 or ("v6" in kind)
    oh_dtype = jnp.bfloat16 if has_bf16_vpu else jnp.float32   # v5e: no bf16 VALU
    oh_bytes = jnp.dtype(oh_dtype).itemsize

    # --- inputs: no full-tensor batch padding (partial last block instead) ---
    ids = input_ids.astype(jnp.int32)
    mask = attention_mask                       # cast to f32 inside the kernel
    Bp = B
    if B < SUB:                                 # only tiny batches pay a (cheap) pad
        ids = jnp.pad(ids, ((0, SUB - B), (0, 0)))
        mask = jnp.pad(mask, ((0, SUB - B), (0, 0)))
        Bp = SUB

    # --- sequence tiling: bound the (TB, TS, V) temporary for long sequences ---
    TS = S if S <= 512 else 512                 # 512 is a multiple of 128 (lane rule)
    ns = pl.cdiv(S, TS)
    mask_seq_tail = (ns * TS != S)              # zero garbage cols of a ragged S tile

    # --- batch tile from the one-hot working-set budget, not a flat 256 ---
    budget = (8 << 20) if is_v7 else (16 << 20)
    tb_fit = max(SUB, (budget // max(1, TS * V * oh_bytes)) // SUB * SUB)
    B8 = _round_up(Bp, SUB)
    TB = min(256, B8, tb_fit)
    if B8 > SUB:                                # >=2 parallel steps -> both v7x TCs busy
        TB = min(TB, max(SUB, (B8 // 2) // SUB * SUB))
    nb = pl.cdiv(Bp, TB)

    Lp = _round_up(L, LANE)                     # lane-dense output slab

    # --- weights (resident in VMEM, MXU operands, f32 accumulation) ---------
    # counts <= S; bf16 holds integers exactly only up to 256.
    mxu_dtype = jnp.bfloat16 if S <= 256 else jnp.float32
    table_x = table.astype(mxu_dtype)
    w1_x = w1.astype(jnp.bfloat16)
    b1_2d = b1.reshape(1, M).astype(jnp.float32)
    wsm_p = jnp.zeros((M, Lp), jnp.bfloat16).at[:, :L].set(wsm.astype(jnp.bfloat16))
    bsm_p = jnp.zeros((1, Lp), jnp.float32).at[0, :L].set(bsm.astype(jnp.float32))

    # --- VMEM limit: derived from operands, capped per-generation ----------
    def _nbytes(a):
        return int(a.size) * a.dtype.itemsize
    resident = (_nbytes(table_x) + _nbytes(w1_x) + _nbytes(b1_2d)
                + _nbytes(wsm_p) + _nbytes(bsm_p))
    streamed = 2 * TB * TS * (4 + mask.dtype.itemsize)          # ids + mask, dbl-buffered
    out_blk = 2 * TB * Lp * 4
    onehot_t = 2 * TB * TS * V * oh_bytes                       # select temp + compare mask
    scratch = TB * (V + 1) * 4
    need = 2 * resident + streamed + out_blk + onehot_t + scratch + (4 << 20)
    ceiling = (56 << 20) if is_v7 else (100 << 20)              # v7x: 64 MiB physical VMEM
    vmem_limit = int(min(ceiling, max(32 << 20, need)))

    kernel = functools.partial(_bow_kernel, oh_dtype=oh_dtype, seq_len=S,
                               mask_seq_tail=mask_seq_tail)

    def _call(single_buffer_weights):
        res_kw = {"pipeline_mode": pl.Buffered(1)} if single_buffer_weights else {}
        grid_spec = pltpu.PrefetchScalarGridSpec(
            num_scalar_prefetch=0,
            grid=(nb, ns),                                      # reduction axis (S) last
            in_specs=[
                pl.BlockSpec((TB, TS), lambda i, s: (i, s)),             # input_ids
                pl.BlockSpec((TB, TS), lambda i, s: (i, s)),             # attention_mask
                pl.BlockSpec((V, E), lambda i, s: (0, 0), **res_kw),     # embedding table
                pl.BlockSpec((E, M), lambda i, s: (0, 0), **res_kw),     # W1
                pl.BlockSpec((1, M), lambda i, s: (0, 0), **res_kw),     # b1
                pl.BlockSpec((M, Lp), lambda i, s: (0, 0), **res_kw),    # Wsm (padded)
                pl.BlockSpec((1, Lp), lambda i, s: (0, 0), **res_kw),    # bsm (padded)
            ],
            out_specs=pl.BlockSpec((TB, Lp), lambda i, s: (i, 0)),
            scratch_shapes=[pltpu.VMEM((TB, V), jnp.float32),
                            pltpu.VMEM((TB, 1), jnp.float32)],
        )
        return pl.pallas_call(
            kernel,
            out_shape=jax.ShapeDtypeStruct((Bp, Lp), jnp.float32),
            grid_spec=grid_spec,
            compiler_params=pltpu.CompilerParams(
                dimension_semantics=("parallel", "arbitrary"),
                vmem_limit_bytes=vmem_limit,
            ),
        )(ids, mask, table_x, w1_x, b1_2d, wsm_p, bsm_p)

    try:
        logits_full = _call(True)      # single-buffer the never-changing weight blocks
    except Exception:
        logits_full = _call(False)     # fall back if pipeline_mode is unsupported

    return None, logits_full[:B, :L]


def _reference_forward(input_ids, attention_mask, params):
    emb = params["embd"][input_ids]                               # (B, S, E)
    m = attention_mask.astype(jnp.float32)
    lengths = jnp.maximum(jnp.sum(m, axis=1, keepdims=True), 1.0)
    avg = jnp.einsum("bse,bs->be", emb, m) / lengths
    h = jnp.maximum(avg @ params["w1"] + params["b1"], 0.0)
    return h @ params["wsm"] + params["bsm"]


def init_params(key, v_size, embd_dim, mlp_d, num_labels):
    k1, k2, k3, k4, k5 = jax.random.split(key, 5)
    return {
        "embd": jax.random.normal(k1, (v_size, embd_dim), jnp.float32) * 0.1,
        "w1":   jax.random.normal(k2, (embd_dim, mlp_d), jnp.float32) * 0.05,
        "b1":   jax.random.normal(k3, (mlp_d,), jnp.float32) * 0.01,
        "wsm":  jax.random.normal(k4, (mlp_d, num_labels), jnp.float32) * 0.05,
        "bsm":  jax.random.normal(k5, (num_labels,), jnp.float32) * 0.01,
    }


if __name__ == "__main__":
    # Small shapes consistent with the module: vocab=10 (module default),
    # batch=2, seq=8, embd_dim=32, mlp_d=64, num_labels=3, n_layers=1.
    V, B, S, E, M, L = 10, 2, 8, 32, 64, 3

    key = jax.random.PRNGKey(0)
    kp, ki = jax.random.split(key)

    params = init_params(kp, V, E, M, L)

    input_ids = jax.random.randint(ki, (B, S), 0, V, dtype=jnp.int32)
    # attention_mask: prefix of ones (valid tokens), then zeros.
    lengths = jnp.array([S, S // 2], dtype=jnp.int32)
    attention_mask = (jnp.arange(S)[None, :] < lengths[:, None]).astype(jnp.int32)

    loss, logits = bag_of_words_forward(input_ids, attention_mask, params)
    logits = jax.block_until_ready(logits)

    ref = _reference_forward(input_ids, attention_mask, params)

    assert loss is None
    assert logits.shape == (B, L)
    assert bool(jnp.all(jnp.isfinite(logits)))
    # bf16 weights + approx reciprocal => tolerance check, not bitwise.
    assert bool(jnp.allclose(logits, ref, rtol=5e-2, atol=5e-3))
    print("KERNEL_OK")
</pallas_src>

<mosaic_0001>
module attributes {stable_mosaic.version = 11 : i64} {
  func.func @_bow_kernel(%arg0: i32, %arg1: i32, %arg2: memref<8x8xi32, #tpu.memory_space<vmem>>, %arg3: memref<8x8xi32, #tpu.memory_space<vmem>>, %arg4: memref<10x32xbf16, #tpu.memory_space<vmem>>, %arg5: memref<32x64xbf16, #tpu.memory_space<vmem>>, %arg6: memref<1x64xf32, #tpu.memory_space<vmem>>, %arg7: memref<64x128xbf16, #tpu.memory_space<vmem>>, %arg8: memref<1x128xf32, #tpu.memory_space<vmem>>, %arg9: memref<8x128xf32, #tpu.memory_space<vmem>>, %arg10: memref<8x10xf32, #tpu.memory_space<vmem>>, %arg11: memref<8x1xf32, #tpu.memory_space<vmem>>) attributes {dimension_semantics = [#tpu.dimension_semantics<parallel>, #tpu.dimension_semantics<arbitrary>], iteration_bounds = array<i64: 1, 1>, scalar_prefetch = 0 : i64, scratch_operands = 2 : i64, tpu.core_type = #tpu.core_type<tc>, window_params = [{transform_indices = @transform_0, window_bounds = array<i64: 8, 8>}, {transform_indices = @transform_1, window_bounds = array<i64: 8, 8>}, {pipeline_mode = #tpu.pipeline_mode<synchronous>, transform_indices = @transform_2, window_bounds = array<i64: 10, 32>}, {pipeline_mode = #tpu.pipeline_mode<synchronous>, transform_indices = @transform_3, window_bounds = array<i64: 32, 64>}, {pipeline_mode = #tpu.pipeline_mode<synchronous>, transform_indices = @transform_4, window_bounds = array<i64: 1, 64>}, {pipeline_mode = #tpu.pipeline_mode<synchronous>, transform_indices = @transform_5, window_bounds = array<i64: 64, 128>}, {pipeline_mode = #tpu.pipeline_mode<synchronous>, transform_indices = @transform_6, window_bounds = array<i64: 1, 128>}, {transform_indices = @transform_7, window_bounds = array<i64: 8, 128>}]} {
    %c0_i32 = arith.constant 0 : i32
    %0 = arith.cmpi eq, %arg1, %c0_i32 : i32
    %1 = arith.extui %0 : i1 to i32
    %c0_i32_0 = arith.constant 0 : i32
    %2 = arith.cmpi ne, %1, %c0_i32_0 : i32
    scf.if %2 {
      %cst_16 = arith.constant 0.000000e+00 : f32
      %28 = vector.broadcast %cst_16 : f32 to vector<8x10xf32>
      %c0_17 = arith.constant 0 : index
      %c0_18 = arith.constant 0 : index
      %29 = vector.load %arg10[%c0_17, %c0_18] : memref<8x10xf32, #tpu.memory_space<vmem>>, vector<8x10xf32>
      tpu.vector_store %arg10[%c0_17, %c0_18], %28 {strides = array<i32>} : memref<8x10xf32, #tpu.memory_space<vmem>>, vector<8x10xf32>,
      %cst_19 = arith.constant 0.000000e+00 : f32
      %30 = vector.broadcast %cst_19 : f32 to vector<8x1xf32>
      %c0_20 = arith.constant 0 : index
      %c0_21 = arith.constant 0 : index
      %31 = vector.load %arg11[%c0_20, %c0_21] : memref<8x1xf32, #tpu.memory_space<vmem>>, vector<8x1xf32>
      tpu.vector_store %arg11[%c0_20, %c0_21], %30 {strides = array<i32>} : memref<8x1xf32, #tpu.memory_space<vmem>>, vector<8x1xf32>,
    } else {
    }
    %c0 = arith.constant 0 : index
    %c0_1 = arith.constant 0 : index
    %3 = vector.load %arg2[%c0, %c0_1] : memref<8x8xi32, #tpu.memory_space<vmem>>, vector<8x8xi32>
    %c0_2 = arith.constant 0 : index
    %c0_3 = arith.constant 0 : index
    %4 = vector.load %arg3[%c0_2, %c0_3] : memref<8x8xi32, #tpu.memory_space<vmem>>, vector<8x8xi32>
    %5 = arith.sitofp %4 : vector<8x8xi32> to vector<8x8xf32>
    %c0_4 = arith.constant 0 : index
    %c0_5 = arith.constant 0 : index
    %6 = vector.load %arg11[%c0_4, %c0_5] : memref<8x1xf32, #tpu.memory_space<vmem>>, vector<8x1xf32>
    %cst = arith.constant dense<0.000000e+00> : vector<8xf32>
    %7 = vector.multi_reduction <add>, %5, %cst [1] : vector<8x8xf32> to vector<8xf32>
    %8 = vector.shape_cast %7 : vector<8xf32> to vector<8x1xf32>
    %9 = arith.addf %6, %8 : vector<8x1xf32>
    %c0_6 = arith.constant 0 : index
    %c0_7 = arith.constant 0 : index
    %10 = vector.load %arg11[%c0_6, %c0_7] : memref<8x1xf32, #tpu.memory_space<vmem>>, vector<8x1xf32>
    tpu.vector_store %arg11[%c0_6, %c0_7], %9 {strides = array<i32>} : memref<8x1xf32, #tpu.memory_space<vmem>>, vector<8x1xf32>,
    %11 = tpu.iota {dimensions = array<i32: 2>} : vector<1x1x10xi32>
    %12 = vector.shape_cast %3 : vector<8x8xi32> to vector<8x8x1xi32>
    %13 = vector.broadcast %12 : vector<8x8x1xi32> to vector<8x8x10xi32>
    %14 = vector.broadcast %11 : vector<1x1x10xi32> to vector<8x8x10xi32>
    %15 = arith.cmpi eq, %13, %14 : vector<8x8x10xi32>
    %16 = vector.shape_cast %5 : vector<8x8xf32> to vector<8x8x1xf32>
    %cst_8 = arith.constant 0.000000e+00 : f32
    %17 = vector.shape_cast %16 : vector<8x8x1xf32> to vector<8x8x1xf32>
    %18 = vector.broadcast %17 : vector<8x8x1xf32> to vector<8x8x10xf32>
    %19 = vector.broadcast %cst_8 : f32 to vector<8x8x10xf32>
    %20 = arith.select %15, %18, %19 : vector<8x8x10xi1>, vector<8x8x10xf32>
    %c0_9 = arith.constant 0 : index
    %c0_10 = arith.constant 0 : index
    %21 = vector.load %arg10[%c0_9, %c0_10] : memref<8x10xf32, #tpu.memory_space<vmem>>, vector<8x10xf32>
    %cst_11 = arith.constant dense<0.000000e+00> : vector<8x10xf32>
    %22 = vector.multi_reduction <add>, %20, %cst_11 [1] : vector<8x8x10xf32> to vector<8x10xf32>
    %23 = arith.addf %21, %22 : vector<8x10xf32>
    %c0_12 = arith.constant 0 : index
    %c0_13 = arith.constant 0 : index
    %24 = vector.load %arg10[%c0_12, %c0_13] : memref<8x10xf32, #tpu.memory_space<vmem>>, vector<8x10xf32>
    tpu.vector_store %arg10[%c0_12, %c0_13], %23 {strides = array<i32>} : memref<8x10xf32, #tpu.memory_space<vmem>>, vector<8x10xf32>,
    %c0_i32_14 = arith.constant 0 : i32
    %25 = arith.cmpi eq, %arg1, %c0_i32_14 : i32
    %26 = arith.extui %25 : i1 to i32
    %c0_i32_15 = arith.constant 0 : i32
    %27 = arith.cmpi ne, %26, %c0_i32_15 : i32
    scf.if %27 {
      %c0_16 = arith.constant 0 : index
      %c0_17 = arith.constant 0 : index
      %28 = vector.load %arg11[%c0_16, %c0_17] : memref<8x1xf32, #tpu.memory_space<vmem>>, vector<8x1xf32>
      %cst_18 = arith.constant 1.000000e+00 : f32
      %29 = vector.broadcast %cst_18 : f32 to vector<8x1xf32>
      %30 = arith.maximumf %28, %29 : vector<8x1xf32>
      %31 = tpu.reciprocal %30 {approx = true} : vector<8x1xf32> -> vector<8x1xf32>
      %c0_19 = arith.constant 0 : index
      %c0_20 = arith.constant 0 : index
      %32 = vector.load %arg10[%c0_19, %c0_20] : memref<8x10xf32, #tpu.memory_space<vmem>>, vector<8x10xf32>
      %33 = arith.truncf %32 : vector<8x10xf32> to vector<8x10xbf16>
      %c0_21 = arith.constant 0 : index
      %c0_22 = arith.constant 0 : index
      %34 = vector.load %arg4[%c0_21, %c0_22] : memref<10x32xbf16, #tpu.memory_space<vmem>>, vector<10x32xbf16>
      %cst_23 = arith.constant dense<0.000000e+00> : vector<8x32xf32>
      %35 = tpu.matmul %33, %34, %cst_23 {dimension_numbers = #tpu.dot_dimension_numbers<[1], [0], [0], [1], [0, 0, 1, 1], [], []>} : vector<8x10xbf16>, vector<10x32xbf16>, vector<8x32xf32> -> vector<8x32xf32>
      %36 = vector.broadcast %31 : vector<8x1xf32> to vector<8x32xf32>
      %37 = arith.mulf %35, %36 : vector<8x32xf32>
      %38 = arith.truncf %37 : vector<8x32xf32> to vector<8x32xbf16>
      %c0_24 = arith.constant 0 : index
      %c0_25 = arith.constant 0 : index
      %39 = vector.load %arg5[%c0_24, %c0_25] : memref<32x64xbf16, #tpu.memory_space<vmem>>, vector<32x64xbf16>
      %cst_26 = arith.constant dense<0.000000e+00> : vector<8x64xf32>
      %40 = tpu.matmul %38, %39, %cst_26 {dimension_numbers = #tpu.dot_dimension_numbers<[1], [0], [0], [1], [0, 0, 1, 1], [], []>} : vector<8x32xbf16>, vector<32x64xbf16>, vector<8x64xf32> -> vector<8x64xf32>
      %c0_27 = arith.constant 0 : index
      %c0_28 = arith.constant 0 : index
      %41 = vector.load %arg6[%c0_27, %c0_28] : memref<1x64xf32, #tpu.memory_space<vmem>>, vector<1x64xf32>
      %42 = vector.broadcast %41 : vector<1x64xf32> to vector<8x64xf32>
      %43 = arith.addf %40, %42 : vector<8x64xf32>
      %cst_29 = arith.constant 0.000000e+00 : f32
      %44 = vector.broadcast %cst_29 : f32 to vector<8x64xf32>
      %45 = arith.maximumf %43, %44 : vector<8x64xf32>
      %46 = arith.truncf %45 : vector<8x64xf32> to vector<8x64xbf16>
      %c0_30 = arith.constant 0 : index
      %c0_31 = arith.constant 0 : index
      %47 = vector.load %arg7[%c0_30, %c0_31] : memref<64x128xbf16, #tpu.memory_space<vmem>>, vector<64x128xbf16>
      %cst_32 = arith.constant dense<0.000000e+00> : vector<8x128xf32>
      %48 = tpu.matmul %46, %47, %cst_32 {dimension_numbers = #tpu.dot_dimension_numbers<[1], [0], [0], [1], [0, 0, 1, 1], [], []>} : vector<8x64xbf16>, vector<64x128xbf16>, vector<8x128xf32> -> vector<8x128xf32>
      %c0_33 = arith.constant 0 : index
      %c0_34 = arith.constant 0 : index
      %49 = vector.load %arg8[%c0_33, %c0_34] : memref<1x128xf32, #tpu.memory_space<vmem>>, vector<1x128xf32>
      %50 = vector.broadcast %49 : vector<1x128xf32> to vector<8x128xf32>
      %51 = arith.addf %48, %50 : vector<8x128xf32>
      %c0_35 = arith.constant 0 : index
      %c0_36 = arith.constant 0 : index
      %52 = vector.load %arg9[%c0_35, %c0_36] : memref<8x128xf32, #tpu.memory_space<vmem>>, vector<8x128xf32>
      tpu.vector_store %arg9[%c0_35, %c0_36], %51 {strides = array<i32>} : memref<8x128xf32, #tpu.memory_space<vmem>>, vector<8x128xf32>,
    } else {
    }
    return
  }
  func.func @transform_0(%arg0: i32, %arg1: i32) -> (i32, i32) {
    %c0_i32 = arith.constant 0 : i32
    return %arg0, %arg1 : i32, i32
  }
  func.func @transform_1(%arg0: i32, %arg1: i32) -> (i32, i32) {
    %c0_i32 = arith.constant 0 : i32
    return %arg0, %arg1 : i32, i32
  }
  func.func @transform_2(%arg0: i32, %arg1: i32) -> (i32, i32) {
    %c0_i32 = arith.constant 0 : i32
    %c0_i32_0 = arith.constant 0 : i32
    %c0_i32_1 = arith.constant 0 : i32
    return %c0_i32, %c0_i32_0 : i32, i32
  }
  func.func @transform_3(%arg0: i32, %arg1: i32) -> (i32, i32) {
    %c0_i32 = arith.constant 0 : i32
    %c0_i32_0 = arith.constant 0 : i32
    %c0_i32_1 = arith.constant 0 : i32
    return %c0_i32, %c0_i32_0 : i32, i32
  }
  func.func @transform_4(%arg0: i32, %arg1: i32) -> (i32, i32) {
    %c0_i32 = arith.constant 0 : i32
    %c0_i32_0 = arith.constant 0 : i32
    %c0_i32_1 = arith.constant 0 : i32
    return %c0_i32, %c0_i32_0 : i32, i32
  }
  func.func @transform_5(%arg0: i32, %arg1: i32) -> (i32, i32) {
    %c0_i32 = arith.constant 0 : i32
    %c0_i32_0 = arith.constant 0 : i32
    %c0_i32_1 = arith.constant 0 : i32
    return %c0_i32, %c0_i32_0 : i32, i32
  }
  func.func @transform_6(%arg0: i32, %arg1: i32) -> (i32, i32) {
    %c0_i32 = arith.constant 0 : i32
    %c0_i32_0 = arith.constant 0 : i32
    %c0_i32_1 = arith.constant 0 : i32
    return %c0_i32, %c0_i32_0 : i32, i32
  }
  func.func @transform_7(%arg0: i32, %arg1: i32) -> (i32, i32) {
    %c0_i32 = arith.constant 0 : i32
    %c0_i32_0 = arith.constant 0 : i32
    return %arg0, %c0_i32 : i32, i32
  }
}

module attributes {stable_mosaic.version = 11 : i64} {
  func.func @_bow_kernel(%arg0: i32, %arg1: i32, %arg2: memref<8x8xi32, #tpu.memory_space<vmem>>, %arg3: memref<8x8xi32, #tpu.memory_space<vmem>>, %arg4: memref<10x32xbf16, #tpu.memory_space<vmem>>, %arg5: memref<32x64xbf16, #tpu.memory_space<vmem>>, %arg6: memref<1x64xf32, #tpu.memory_space<vmem>>, %arg7: memref<64x128xbf16, #tpu.memory_space<vmem>>, %arg8: memref<1x128xf32, #tpu.memory_space<vmem>>, %arg9: memref<8x128xf32, #tpu.memory_space<vmem>>, %arg10: memref<8x10xf32, #tpu.memory_space<vmem>>, %arg11: memref<8x1xf32, #tpu.memory_space<vmem>>) attributes {dimension_semantics = [#tpu.dimension_semantics<parallel>, #tpu.dimension_semantics<arbitrary>], iteration_bounds = array<i64: 1, 1>, scalar_prefetch = 0 : i64, scratch_operands = 2 : i64, tpu.core_type = #tpu.core_type<tc>, window_params = [{transform_indices = @transform_0, window_bounds = array<i64: 8, 8>}, {transform_indices = @transform_1, window_bounds = array<i64: 8, 8>}, {pipeline_mode = #tpu.pipeline_mode<synchronous>, transform_indices = @transform_2, window_bounds = array<i64: 10, 32>}, {pipeline_mode = #tpu.pipeline_mode<synchronous>, transform_indices = @transform_3, window_bounds = array<i64: 32, 64>}, {pipeline_mode = #tpu.pipeline_mode<synchronous>, transform_indices = @transform_4, window_bounds = array<i64: 1, 64>}, {pipeline_mode = #tpu.pipeline_mode<synchronous>, transform_indices = @transform_5, window_bounds = array<i64: 64, 128>}, {pipeline_mode = #tpu.pipeline_mode<synchronous>, transform_indices = @transform_6, window_bounds = array<i64: 1, 128>}, {transform_indices = @transform_7, window_bounds = array<i64: 8, 128>}]} {
    %c0_i32 = arith.constant 0 : i32
    %0 = arith.cmpi eq, %arg1, %c0_i32 : i32
    %1 = arith.extui %0 : i1 to i32
    %c0_i32_0 = arith.constant 0 : i32
    %2 = arith.cmpi ne, %1, %c0_i32_0 : i32
    scf.if %2 {
      %cst_16 = arith.constant 0.000000e+00 : f32
      %28 = vector.broadcast %cst_16 : f32 to vector<8x10xf32>
      %c0_17 = arith.constant 0 : index
      %c0_18 = arith.constant 0 : index
      %29 = vector.load %arg10[%c0_17, %c0_18] : memref<8x10xf32, #tpu.memory_space<vmem>>, vector<8x10xf32>
      tpu.vector_store %arg10[%c0_17, %c0_18], %28 {strides = array<i32>} : memref<8x10xf32, #tpu.memory_space<vmem>>, vector<8x10xf32>,
      %cst_19 = arith.constant 0.000000e+00 : f32
      %30 = vector.broadcast %cst_19 : f32 to vector<8x1xf32>
      %c0_20 = arith.constant 0 : index
      %c0_21 = arith.constant 0 : index
      %31 = vector.load %arg11[%c0_20, %c0_21] : memref<8x1xf32, #tpu.memory_space<vmem>>, vector<8x1xf32>
      tpu.vector_store %arg11[%c0_20, %c0_21], %30 {strides = array<i32>} : memref<8x1xf32, #tpu.memory_space<vmem>>, vector<8x1xf32>,
    } else {
    }
    %c0 = arith.constant 0 : index
    %c0_1 = arith.constant 0 : index
    %3 = vector.load %arg2[%c0, %c0_1] : memref<8x8xi32, #tpu.memory_space<vmem>>, vector<8x8xi32>
    %c0_2 = arith.constant 0 : index
    %c0_3 = arith.constant 0 : index
    %4 = vector.load %arg3[%c0_2, %c0_3] : memref<8x8xi32, #tpu.memory_space<vmem>>, vector<8x8xi32>
    %5 = arith.sitofp %4 : vector<8x8xi32> to vector<8x8xf32>
    %c0_4 = arith.constant 0 : index
    %c0_5 = arith.constant 0 : index
    %6 = vector.load %arg11[%c0_4, %c0_5] : memref<8x1xf32, #tpu.memory_space<vmem>>, vector<8x1xf32>
    %cst = arith.constant dense<0.000000e+00> : vector<8xf32>
    %7 = vector.multi_reduction <add>, %5, %cst [1] : vector<8x8xf32> to vector<8xf32>
    %8 = vector.shape_cast %7 : vector<8xf32> to vector<8x1xf32>
    %9 = arith.addf %6, %8 : vector<8x1xf32>
    %c0_6 = arith.constant 0 : index
    %c0_7 = arith.constant 0 : index
    %10 = vector.load %arg11[%c0_6, %c0_7] : memref<8x1xf32, #tpu.memory_space<vmem>>, vector<8x1xf32>
    tpu.vector_store %arg11[%c0_6, %c0_7], %9 {strides = array<i32>} : memref<8x1xf32, #tpu.memory_space<vmem>>, vector<8x1xf32>,
    %11 = tpu.iota {dimensions = array<i32: 2>} : vector<1x1x10xi32>
    %12 = vector.shape_cast %3 : vector<8x8xi32> to vector<8x8x1xi32>
    %13 = vector.broadcast %12 : vector<8x8x1xi32> to vector<8x8x10xi32>
    %14 = vector.broadcast %11 : vector<1x1x10xi32> to vector<8x8x10xi32>
    %15 = arith.cmpi eq, %13, %14 : vector<8x8x10xi32>
    %16 = vector.shape_cast %5 : vector<8x8xf32> to vector<8x8x1xf32>
    %cst_8 = arith.constant 0.000000e+00 : f32
    %17 = vector.shape_cast %16 : vector<8x8x1xf32> to vector<8x8x1xf32>
    %18 = vector.broadcast %17 : vector<8x8x1xf32> to vector<8x8x10xf32>
    %19 = vector.broadcast %cst_8 : f32 to vector<8x8x10xf32>
    %20 = arith.select %15, %18, %19 : vector<8x8x10xi1>, vector<8x8x10xf32>
    %c0_9 = arith.constant 0 : index
    %c0_10 = arith.constant 0 : index
    %21 = vector.load %arg10[%c0_9, %c0_10] : memref<8x10xf32, #tpu.memory_space<vmem>>, vector<8x10xf32>
    %cst_11 = arith.constant dense<0.000000e+00> : vector<8x10xf32>
    %22 = vector.multi_reduction <add>, %20, %cst_11 [1] : vector<8x8x10xf32> to vector<8x10xf32>
    %23 = arith.addf %21, %22 : vector<8x10xf32>
    %c0_12 = arith.constant 0 : index
    %c0_13 = arith.constant 0 : index
    %24 = vector.load %arg10[%c0_12, %c0_13] : memref<8x10xf32, #tpu.memory_space<vmem>>, vector<8x10xf32>
    tpu.vector_store %arg10[%c0_12, %c0_13], %23 {strides = array<i32>} : memref<8x10xf32, #tpu.memory_space<vmem>>, vector<8x10xf32>,
    %c0_i32_14 = arith.constant 0 : i32
    %25 = arith.cmpi eq, %arg1, %c0_i32_14 : i32
    %26 = arith.extui %25 : i1 to i32
    %c0_i32_15 = arith.constant 0 : i32
    %27 = arith.cmpi ne, %26, %c0_i32_15 : i32
    scf.if %27 {
      %c0_16 = arith.constant 0 : index
      %c0_17 = arith.constant 0 : index
      %28 = vector.load %arg11[%c0_16, %c0_17] : memref<8x1xf32, #tpu.memory_space<vmem>>, vector<8x1xf32>
      %cst_18 = arith.constant 1.000000e+00 : f32
      %29 = vector.broadcast %cst_18 : f32 to vector<8x1xf32>
      %30 = arith.maximumf %28, %29 : vector<8x1xf32>
      %31 = tpu.reciprocal %30 {approx = true} : vector<8x1xf32> -> vector<8x1xf32>
      %c0_19 = arith.constant 0 : index
      %c0_20 = arith.constant 0 : index
      %32 = vector.load %arg10[%c0_19, %c0_20] : memref<8x10xf32, #tpu.memory_space<vmem>>, vector<8x10xf32>
      %33 = arith.truncf %32 : vector<8x10xf32> to vector<8x10xbf16>
      %c0_21 = arith.constant 0 : index
      %c0_22 = arith.constant 0 : index
      %34 = vector.load %arg4[%c0_21, %c0_22] : memref<10x32xbf16, #tpu.memory_space<vmem>>, vector<10x32xbf16>
      %cst_23 = arith.constant dense<0.000000e+00> : vector<8x32xf32>
      %35 = tpu.matmul %33, %34, %cst_23 {dimension_numbers = #tpu.dot_dimension_numbers<[1], [0], [0], [1], [0, 0, 1, 1], [], []>} : vector<8x10xbf16>, vector<10x32xbf16>, vector<8x32xf32> -> vector<8x32xf32>
      %36 = vector.broadcast %31 : vector<8x1xf32> to vector<8x32xf32>
      %37 = arith.mulf %35, %36 : vector<8x32xf32>
      %38 = arith.truncf %37 : vector<8x32xf32> to vector<8x32xbf16>
      %c0_24 = arith.constant 0 : index
      %c0_25 = arith.constant 0 : index
      %39 = vector.load %arg5[%c0_24, %c0_25] : memref<32x64xbf16, #tpu.memory_space<vmem>>, vector<32x64xbf16>
      %cst_26 = arith.constant dense<0.000000e+00> : vector<8x64xf32>
      %40 = tpu.matmul %38, %39, %cst_26 {dimension_numbers = #tpu.dot_dimension_numbers<[1], [0], [0], [1], [0, 0, 1, 1], [], []>} : vector<8x32xbf16>, vector<32x64xbf16>, vector<8x64xf32> -> vector<8x64xf32>
      %c0_27 = arith.constant 0 : index
      %c0_28 = arith.constant 0 : index
      %41 = vector.load %arg6[%c0_27, %c0_28] : memref<1x64xf32, #tpu.memory_space<vmem>>, vector<1x64xf32>
      %42 = vector.broadcast %41 : vector<1x64xf32> to vector<8x64xf32>
      %43 = arith.addf %40, %42 : vector<8x64xf32>
      %cst_29 = arith.constant 0.000000e+00 : f32
      %44 = vector.broadcast %cst_29 : f32 to vector<8x64xf32>
      %45 = arith.maximumf %43, %44 : vector<8x64xf32>
      %46 = arith.truncf %45 : vector<8x64xf32> to vector<8x64xbf16>
      %c0_30 = arith.constant 0 : index
      %c0_31 = arith.constant 0 : index
      %47 = vector.load %arg7[%c0_30, %c0_31] : memref<64x128xbf16, #tpu.memory_space<vmem>>, vector<64x128xbf16>
      %cst_32 = arith.constant dense<0.000000e+00> : vector<8x128xf32>
      %48 = tpu.matmul %46, %47, %cst_32 {dimension_numbers = #tpu.dot_dimension_numbers<[1], [0], [0], [1], [0, 0, 1, 1], [], []>} : vector<8x64xbf16>, vector<64x128xbf16>, vector<8x128xf32> -> vector<8x128xf32>
      %c0_33 = arith.constant 0 : index
      %c0_34 = arith.constant 0 : index
      %49 = vector.load %arg8[%c0_33, %c0_34] : memref<1x128xf32, #tpu.memory_space<vmem>>, vector<1x128xf32>
      %50 = vector.broadcast %49 : vector<1x128xf32> to vector<8x128xf32>
      %51 = arith.addf %48, %50 : vector<8x128xf32>
      %c0_35 = arith.constant 0 : index
      %c0_36 = arith.constant 0 : index
      %52 = vector.load %arg9[%c0_35, %c0_36] : memref<8x128xf32, #tpu.memory_space<vmem>>, vector<8x128xf32>
      tpu.vector_store %arg9[%c0_35, %c0_36], %51 {strides = array<i32>} : memref<8x128xf32, #tpu.memory_space<vmem>>, vector<8x128xf32>,
    } else {
    }
    return
  }
  func.func @transform_0(%arg0: i32, %arg1: i32) -> (i32, i32) {
    %c0_i32 = arith.constant 0 : i32
    return %arg0, %arg1 : i32, i32
  }
  func.func @transform_1(%arg0: i32, %arg1: i32) -> (i32, i32) {
    %c0_i32 = arith.constant 0 : i32
    return %arg0, %arg1 : i32, i32
  }
  func.func @transform_2(%arg0: i32, %arg1: i32) -> (i32, i32) {
    %c0_i32 = arith.constant 0 : i32
    %c0_i32_0 = arith.constant 0 : i32
    %c0_i32_1 = arith.constant 0 : i32
    return %c0_i32, %c0_i32_0 : i32, i32
  }
  func.func @transform_3(%arg0: i32, %arg1: i32) -> (i32, i32) {
    %c0_i32 = arith.constant 0 : i32
    %c0_i32_0 = arith.constant 0 : i32
    %c0_i32_1 = arith.constant 0 : i32
    return %c0_i32, %c0_i32_0 : i32, i32
  }
  func.func @transform_4(%arg0: i32, %arg1: i32) -> (i32, i32) {
    %c0_i32 = arith.constant 0 : i32
    %c0_i32_0 = arith.constant 0 : i32
    %c0_i32_1 = arith.constant 0 : i32
    return %c0_i32, %c0_i32_0 : i32, i32
  }
  func.func @transform_5(%arg0: i32, %arg1: i32) -> (i32, i32) {
    %c0_i32 = arith.constant 0 : i32
    %c0_i32_0 = arith.constant 0 : i32
    %c0_i32_1 = arith.constant 0 : i32
    return %c0_i32, %c0_i32_0 : i32, i32
  }
  func.func @transform_6(%arg0: i32, %arg1: i32) -> (i32, i32) {
    %c0_i32 = arith.constant 0 : i32
    %c0_i32_0 = arith.constant 0 : i32
    %c0_i32_1 = arith.constant 0 : i32
    return %c0_i32, %c0_i32_0 : i32, i32
  }
  func.func @transform_7(%arg0: i32, %arg1: i32) -> (i32, i32) {
    %c0_i32 = arith.constant 0 : i32
    %c0_i32_0 = arith.constant 0 : i32
    return %arg0, %c0_i32 : i32, i32
  }
}

</mosaic_0001>

<llo_original>
// kernel: tpu_custom_call.1
$region0: #{tpu_custom_call.1}
  #allocation0 [shape = 'u32[]', space=smem, size = 0x4, offset = 0x4, fixed_abs, tag = 'smem constant byte address 0x4 - core index']
  #allocation1 [shape = 'u32[144,128]{1,0:T(1,128)}', space=vmem, size = 0x12000, scoped, tag = 'internal scratch']
  #allocation2 [shape = 'f32[8,10]{1,0:T(8,128)}', space=vmem, size = 0x1000, scoped, tag = 'scratch operand']
  #allocation3 [shape = 'f32[8,1]{1,0:T(8,128)}', space=vmem, size = 0x1000, scoped, tag = 'scratch operand']
  %s0 = inlined_call_operand.hbm [shape: s32[8,8], index: 0, kind: input, shape index: {}]
  %s1 = inlined_call_operand.hbm [shape: s32[8,8], index: 1, kind: input, shape index: {}]
  %s2 = inlined_call_operand.hbm [shape: bf16[10,32], index: 2, kind: input, shape index: {}]
  %s3 = inlined_call_operand.hbm [shape: bf16[32,64], index: 3, kind: input, shape index: {}]
  %s4 = inlined_call_operand.vmem [shape: f32[1,64], index: 4, kind: input, shape index: {}]
  %s5 = inlined_call_operand.hbm [shape: bf16[64,128], index: 5, kind: input, shape index: {}]
  %s6 = inlined_call_operand.vmem [shape: f32[1,128], index: 6, kind: input, shape index: {}]
  %s7 = inlined_call_operand.hbm [shape: f32[8,128], index: 7, kind: output, shape index: {}]
  %s8 = sld [smem:[#allocation0]]
  $region66: #{tpu_custom_call.1} parent=0
    _
  %s10 = ssub.s32 1, %s8
  %s11 = scalar_select 0, %s10, %s8
  $region1: #{tpu_custom_call.1} parent=0
    #allocation4 [shape = 'u8[4096]{0}', space=vmem, size = 0x1000, scoped, tag = 'input window, operand 0, single buffered']
    #allocation5 [shape = 's32[1]{0}', space=sflag, size = 0x4, scoped, tag = 'scoped memory for tpu_custom_call.1']
    #allocation6 [shape = 's32[1]{0}', space=sflag, size = 0x4, scoped, tag = 'scoped memory for tpu_custom_call.1']
    #allocation7 [shape = 'u8[4096]{0}', space=vmem, size = 0x1000, scoped, tag = 'input window, operand 1, single buffered']
    #allocation8 [shape = 's32[1]{0}', space=sflag, size = 0x4, scoped, tag = 'scoped memory for tpu_custom_call.1']
    #allocation9 [shape = 'u8[4096]{0}', space=vmem, size = 0x1000, scoped, tag = 'input window, operand 2, single buffered']
    #allocation10 [shape = 'u8[8192]{0}', space=vmem, size = 0x2000, scoped, tag = 'input window, operand 3, single buffered']
    #allocation11 [shape = 's32[1]{0}', space=sflag, size = 0x4, scoped, tag = 'scoped memory for tpu_custom_call.1']
    #allocation12 [shape = 'u8[16384]{0}', space=vmem, size = 0x4000, scoped, tag = 'input window, operand 5, single buffered']
    #allocation13 [shape = 'u8[4096]{0}', space=vmem, size = 0x1000, scoped, tag = 'output window, operand 0, single buffered']
    %12 = vsyncpa [#allocation5], 0
    %13 = vsyncpa [#allocation8], 0
    %14 = vsyncpa [#allocation11], 0
    %15 = vsyncpa [#allocation6], 0
    // Predicated region
    $region2: #{tpu_custom_call.1} parent=1 // pred_check
      _
    $region3: #{tpu_custom_call.1} parent=1 // pred_check_branch
      %17 = sbr.rel (0) target = $region5
    $region4: #{tpu_custom_call.1} parent=1 // pred_region
      %s19 = ssub.s32 128, 128
      %20 = vsyncadd [#allocation5], %s19
      %s22 = sshll.u32 [#allocation4], 4
      %s23 = int_to_ptr.vmem [resolvable:$true] %s22
      %25 = dma.hbm_to_vmem [thread:$0]  %s0, 128, %s23, [#allocation5]
    $region5: #{tpu_custom_call.1} parent=1 // pred_fallthru
      _
    // Predicated region
    $region6: #{tpu_custom_call.1} parent=1 // pred_check
      _
    $region7: #{tpu_custom_call.1} parent=1 // pred_check_branch
      %27 = sbr.rel (0) target = $region9
    $region8: #{tpu_custom_call.1} parent=1 // pred_region
      %s29 = ssub.s32 128, 128
      %30 = vsyncadd [#allocation8], %s29
      %s32 = sshll.u32 [#allocation7], 4
      %s33 = int_to_ptr.vmem [resolvable:$true] %s32
      %35 = dma.hbm_to_vmem [thread:$0]  %s1, 128, %s33, [#allocation8]
    $region9: #{tpu_custom_call.1} parent=1 // pred_fallthru
      _
    // Predicated region
    $region10: #{tpu_custom_call.1} parent=1 // pred_check
      _
    $region11: #{tpu_custom_call.1} parent=1 // pred_check_branch
      %37 = sbr.rel (0) target = $region13
    $region12: #{tpu_custom_call.1} parent=1 // pred_region
      %s39 = ssub.s32 128, 128
      %40 = vsyncadd [#allocation8], %s39
      %s41 = sshll.u32 [#allocation9], 4
      %s42 = int_to_ptr.vmem [resolvable:$true] %s41
      %47 = dma.hbm_to_vmem [thread:$0]  %s2, 128, %s42, [#allocation8], 64, 64, 4
    $region13: #{tpu_custom_call.1} parent=1 // pred_fallthru
      _
    // Predicated region
    $region14: #{tpu_custom_call.1} parent=1 // pred_check
      _
    $region15: #{tpu_custom_call.1} parent=1 // pred_check_branch
      %49 = sbr.rel (0) target = $region17
    $region16: #{tpu_custom_call.1} parent=1 // pred_region
      %s51 = ssub.s32 256, 256
      %52 = vsyncadd [#allocation11], %s51
      %s53 = sshll.u32 [#allocation10], 4
      %s54 = int_to_ptr.vmem [resolvable:$true] %s53
      %59 = dma.hbm_to_vmem [thread:$0]  %s3, 256, %s54, [#allocation11], 64, 64, 4
    $region17: #{tpu_custom_call.1} parent=1 // pred_fallthru
      _
    // Predicated region
    $region18: #{tpu_custom_call.1} parent=1 // pred_check
      _
    $region19: #{tpu_custom_call.1} parent=1 // pred_check_branch
      %61 = sbr.rel (0) target = $region21
    $region20: #{tpu_custom_call.1} parent=1 // pred_region
      _
    $region21: #{tpu_custom_call.1} parent=1 // pred_fallthru
      _
    // Predicated region
    $region22: #{tpu_custom_call.1} parent=1 // pred_check
      _
    $region23: #{tpu_custom_call.1} parent=1 // pred_check_branch
      %63 = sbr.rel (0) target = $region25
    $region24: #{tpu_custom_call.1} parent=1 // pred_region
      %s65 = ssub.s32 512, 512
      %66 = vsyncadd [#allocation11], %s65
      %s67 = sshll.u32 [#allocation12], 4
      %s68 = int_to_ptr.vmem [resolvable:$true] %s67
      %73 = dma.hbm_to_vmem [thread:$0]  %s5, 512, %s68, [#allocation11], 64, 64, 4
    $region25: #{tpu_custom_call.1} parent=1 // pred_fallthru
      _
    // Predicated region
    $region26: #{tpu_custom_call.1} parent=1 // pred_check
      _
    $region27: #{tpu_custom_call.1} parent=1 // pred_check_branch
      %75 = sbr.rel (0) target = $region29
    $region28: #{tpu_custom_call.1} parent=1 // pred_region
      _
    $region29: #{tpu_custom_call.1} parent=1 // pred_fallthru
      _
    // Predicated region
    $region30: #{tpu_custom_call.1} parent=1 // pred_check
      _
    $region31: #{tpu_custom_call.1} parent=1 // pred_check_branch
      %77 = sbr.rel (0) target = $region33
    $region32: #{tpu_custom_call.1} parent=1 // pred_region
      %78 = dma.done [#allocation5], 128
    $region33: #{tpu_custom_call.1} parent=1 // pred_fallthru
      _
    // Predicated region
    $region34: #{tpu_custom_call.1} parent=1 // pred_check
      _
    $region35: #{tpu_custom_call.1} parent=1 // pred_check_branch
      %80 = sbr.rel (0) target = $region37
    $region36: #{tpu_custom_call.1} parent=1 // pred_region
      %81 = dma.done [#allocation8], 128
    $region37: #{tpu_custom_call.1} parent=1 // pred_fallthru
      _
    // Predicated region
    $region38: #{tpu_custom_call.1} parent=1 // pred_check
      _
    $region39: #{tpu_custom_call.1} parent=1 // pred_check_branch
      %83 = sbr.rel (0) target = $region41
    $region40: #{tpu_custom_call.1} parent=1 // pred_region
      %84 = dma.done [#allocation8], 128
    $region41: #{tpu_custom_call.1} parent=1 // pred_fallthru
      _
    // Predicated region
    $region42: #{tpu_custom_call.1} parent=1 // pred_check
      _
    $region43: #{tpu_custom_call.1} parent=1 // pred_check_branch
      %86 = sbr.rel (0) target = $region45
    $region44: #{tpu_custom_call.1} parent=1 // pred_region
      %87 = dma.done [#allocation11], 256
    $region45: #{tpu_custom_call.1} parent=1 // pred_fallthru
      _
    // Predicated region
    $region46: #{tpu_custom_call.1} parent=1 // pred_check
      _
    $region47: #{tpu_custom_call.1} parent=1 // pred_check_branch
      %89 = sbr.rel (0) target = $region49
    $region48: #{tpu_custom_call.1} parent=1 // pred_region
      %90 = dma.done [#allocation11], 512
    $region49: #{tpu_custom_call.1} parent=1 // pred_fallthru
      _
    %p92 = scmp.eq.s32.totalorder 0, 0
    // Predicated region
    $region50: #{tpu_custom_call.1} parent=1 // pred_check
      %p93 = pneg %p92
    $region51: #{tpu_custom_call.1} parent=1 // pred_check_branch
      %95 = sbr.rel (%p93) target = $region53
    $region52: #{tpu_custom_call.1} parent=1 // pred_region
      %vm96 = vcmask 80896
      %97 = vst.msk [vmem:[#allocation2] sm:$0xff] %vm96, 0.0
      %vm98 = vcmask 7168
      %99 = vst.msk [vmem:[#allocation3] sm:$0xff] %vm98, 0.0
    $region53: #{tpu_custom_call.1} parent=1 // pred_fallthru
      _
    %v100 = vld [vmem:[#allocation4] sm:$0xff]
    %v101 = vld [vmem:[#allocation7] sm:$0xff]
    %v102 = vcvt.s32.f32 %v101
    %v103 = vld [vmem:[#allocation3] sm:$0xff]
    %vm104 = vcmask 64512
    %v105 = vsel %vm104, %v102, 0.0
    %106 = vadd.xlane.f32.xlu0 %v105
    %v107 = vpop.xlane.xlu0 %106
    %v108 = vadd.f32 %v103, %v107
    %vm109 = vcmask 7168
    %110 = vst.msk [vmem:[#allocation3] sm:$0xff] %vm109, %v108
    %v111 = vlaneseq
    %v112 = vand.u32 %v111, 127
    %v113 = vlaneseq
    %v114 = vshrl.u32 %v113, 7
    %v115 = vsub.s32 0, %v114
    %v116 = vrot.slane %v100, %v115
    %118 = vbcast.lane.b32.xlu0 %v116, 256
    %v119 = vpop.permute.xlu0 %118
    %v120 = vlaneseq
    %v121 = vshrl.u32 %v120, 7
    %v122 = vsub.s32 1, %v121
    %v123 = vrot.slane %v100, %v122
    %125 = vbcast.lane.b32.xlu0 %v123, 256
    %v126 = vpop.permute.xlu0 %125
    %v127 = vlaneseq
    %v128 = vshrl.u32 %v127, 7
    %v129 = vsub.s32 2, %v128
    %v130 = vrot.slane %v100, %v129
    %132 = vbcast.lane.b32.xlu0 %v130, 256
    %v133 = vpop.permute.xlu0 %132
    %v134 = vlaneseq
    %v135 = vshrl.u32 %v134, 7
    %v136 = vsub.s32 3, %v135
    %v137 = vrot.slane %v100, %v136
    %139 = vbcast.lane.b32.xlu0 %v137, 256
    %v140 = vpop.permute.xlu0 %139
    %v141 = vlaneseq
    %v142 = vshrl.u32 %v141, 7
    %v143 = vsub.s32 4, %v142
    %v144 = vrot.slane %v100, %v143
    %146 = vbcast.lane.b32.xlu0 %v144, 256
    %v147 = vpop.permute.xlu0 %146
    %v148 = vlaneseq
    %v149 = vshrl.u32 %v148, 7
    %v150 = vsub.s32 5, %v149
    %v151 = vrot.slane %v100, %v150
    %153 = vbcast.lane.b32.xlu0 %v151, 256
    %v154 = vpop.permute.xlu0 %153
    %v155 = vlaneseq
    %v156 = vshrl.u32 %v155, 7
    %v157 = vsub.s32 6, %v156
    %v158 = vrot.slane %v100, %v157
    %160 = vbcast.lane.b32.xlu0 %v158, 256
    %v161 = vpop.permute.xlu0 %160
    %v162 = vlaneseq
    %v163 = vshrl.u32 %v162, 7
    %v164 = vsub.s32 7, %v163
    %v165 = vrot.slane %v100, %v164
    %167 = vbcast.lane.b32.xlu0 %v165, 256
    %v168 = vpop.permute.xlu0 %167
    %vm169 = vcmp.eq.s32.totalorder %v119, %v112
    %vm170 = vcmp.eq.s32.totalorder %v126, %v112
    %vm171 = vcmp.eq.s32.totalorder %v133, %v112
    %vm172 = vcmp.eq.s32.totalorder %v140, %v112
    %vm173 = vcmp.eq.s32.totalorder %v147, %v112
    %vm174 = vcmp.eq.s32.totalorder %v154, %v112
    %vm175 = vcmp.eq.s32.totalorder %v161, %v112
    %vm176 = vcmp.eq.s32.totalorder %v168, %v112
    %v177 = vlaneseq
    %v178 = vshrl.u32 %v177, 7
    %v179 = vsub.s32 0, %v178
    %v180 = vrot.slane %v102, %v179
    %182 = vbcast.lane.b32.xlu0 %v180, 256
    %v183 = vpop.permute.xlu0 %182
    %v184 = vlaneseq
    %v185 = vshrl.u32 %v184, 7
    %v186 = vsub.s32 1, %v185
    %v187 = vrot.slane %v102, %v186
    %189 = vbcast.lane.b32.xlu0 %v187, 256
    %v190 = vpop.permute.xlu0 %189
    %v191 = vlaneseq
    %v192 = vshrl.u32 %v191, 7
    %v193 = vsub.s32 2, %v192
    %v194 = vrot.slane %v102, %v193
    %196 = vbcast.lane.b32.xlu0 %v194, 256
    %v197 = vpop.permute.xlu0 %196
    %v198 = vlaneseq
    %v199 = vshrl.u32 %v198, 7
    %v200 = vsub.s32 3, %v199
    %v201 = vrot.slane %v102, %v200
    %203 = vbcast.lane.b32.xlu0 %v201, 256
    %v204 = vpop.permute.xlu0 %203
    %v205 = vlaneseq
    %v206 = vshrl.u32 %v205, 7
    %v207 = vsub.s32 4, %v206
    %v208 = vrot.slane %v102, %v207
    %210 = vbcast.lane.b32.xlu0 %v208, 256
    %v211 = vpop.permute.xlu0 %210
    %v212 = vlaneseq
    %v213 = vshrl.u32 %v212, 7
    %v214 = vsub.s32 5, %v213
    %v215 = vrot.slane %v102, %v214
    %217 = vbcast.lane.b32.xlu0 %v215, 256
    %v218 = vpop.permute.xlu0 %217
    %v219 = vlaneseq
    %v220 = vshrl.u32 %v219, 7
    %v221 = vsub.s32 6, %v220
    %v222 = vrot.slane %v102, %v221
    %224 = vbcast.lane.b32.xlu0 %v222, 256
    %v225 = vpop.permute.xlu0 %224
    %v226 = vlaneseq
    %v227 = vshrl.u32 %v226, 7
    %v228 = vsub.s32 7, %v227
    %v229 = vrot.slane %v102, %v228
    %231 = vbcast.lane.b32.xlu0 %v229, 256
    %v232 = vpop.permute.xlu0 %231
    %v233 = vsel %vm169, %v183, 0.0
    %v234 = vsel %vm170, %v190, 0.0
    %v235 = vsel %vm171, %v197, 0.0
    %v236 = vsel %vm172, %v204, 0.0
    %v237 = vsel %vm173, %v211, 0.0
    %v238 = vsel %vm174, %v218, 0.0
    %v239 = vsel %vm175, %v225, 0.0
    %v240 = vsel %vm176, %v232, 0.0
    %v241 = vld [vmem:[#allocation2] sm:$0xff]
    %vm242 = vcmask 80896
    %v243 = vsel %vm242, %v233, 0.0
    %v244 = vrot.slane %v243, 4
    %v245 = vadd.f32 %v243, %v244
    %v246 = vrot.slane %v245, 2
    %v247 = vadd.f32 %v245, %v246
    %v248 = vrot.slane %v247, 1
    %v249 = vadd.f32 %v247, %v248
    %v250 = vsel %vm242, %v234, 0.0
    %v251 = vrot.slane %v250, 4
    %v252 = vadd.f32 %v250, %v251
    %v253 = vrot.slane %v252, 2
    %v254 = vadd.f32 %v252, %v253
    %v255 = vrot.slane %v254, 1
    %v256 = vadd.f32 %v254, %v255
    %v257 = vsel %vm242, %v235, 0.0
    %v258 = vrot.slane %v257, 4
    %v259 = vadd.f32 %v257, %v258
    %v260 = vrot.slane %v259, 2
    %v261 = vadd.f32 %v259, %v260
    %v262 = vrot.slane %v261, 1
    %v263 = vadd.f32 %v261, %v262
    %v264 = vsel %vm242, %v236, 0.0
    %v265 = vrot.slane %v264, 4
    %v266 = vadd.f32 %v264, %v265
    %v267 = vrot.slane %v266, 2
    %v268 = vadd.f32 %v266, %v267
    %v269 = vrot.slane %v268, 1
    %v270 = vadd.f32 %v268, %v269
    %v271 = vsel %vm242, %v237, 0.0
    %v272 = vrot.slane %v271, 4
    %v273 = vadd.f32 %v271, %v272
    %v274 = vrot.slane %v273, 2
    %v275 = vadd.f32 %v273, %v274
    %v276 = vrot.slane %v275, 1
    %v277 = vadd.f32 %v275, %v276
    %v278 = vsel %vm242, %v238, 0.0
    %v279 = vrot.slane %v278, 4
    %v280 = vadd.f32 %v278, %v279
    %v281 = vrot.slane %v280, 2
    %v282 = vadd.f32 %v280, %v281
    %v283 = vrot.slane %v282, 1
    %v284 = vadd.f32 %v282, %v283
    %v285 = vsel %vm242, %v239, 0.0
    %v286 = vrot.slane %v285, 4
    %v287 = vadd.f32 %v285, %v286
    %v288 = vrot.slane %v287, 2
    %v289 = vadd.f32 %v287, %v288
    %v290 = vrot.slane %v289, 1
    %v291 = vadd.f32 %v289, %v290
    %v292 = vsel %vm242, %v240, 0.0
    %v293 = vrot.slane %v292, 4
    %v294 = vadd.f32 %v292, %v293
    %v295 = vrot.slane %v294, 2
    %v296 = vadd.f32 %v294, %v295
    %v297 = vrot.slane %v296, 1
    %v298 = vadd.f32 %v296, %v297
    %vm307 = vcmask 1041409
    %v308 = vsel %vm307, %v256, %v249
    %vm309 = vcmask 1042434
    %v310 = vsel %vm309, %v263, %v308
    %vm311 = vcmask 1043459
    %v312 = vsel %vm311, %v270, %v310
    %vm313 = vcmask 1044484
    %v314 = vsel %vm313, %v277, %v312
    %vm315 = vcmask 1045509
    %v316 = vsel %vm315, %v284, %v314
    %vm317 = vcmask 1046534
    %v318 = vsel %vm317, %v291, %v316
    %vm319 = vcmask 1047559
    %v320 = vsel %vm319, %v298, %v318
    %v322 = vadd.f32 %v241, %v320
    %323 = vst.msk [vmem:[#allocation2] sm:$0xff] %vm242, %v322
    // Predicated region
    $region54: #{tpu_custom_call.1} parent=1 // pred_check
      %p324 = pneg %p92
    $region55: #{tpu_custom_call.1} parent=1 // pred_check_branch
      %326 = sbr.rel (%p324) target = $region57
    $region56: #{tpu_custom_call.1} parent=1 // pred_region
      %v327 = vld [vmem:[#allocation3] sm:$0xff]
      %v328 = vmax.f32 %v327, 1.0
      %v329 = vrcp.pop %v328
      %v330 = vld [vmem:[#allocation2] sm:$0xff]
      %v331 = vpack.c.bf16 %v330, %v330
      %v332 = vld [vmem:[#allocation9] sm:$0xf]
      %v333 = vld [vmem:[#allocation9 + $0x4] sm:$0x1]
      %v336 = vunpack.c.l.b16 %v332
      %v337 = vunpack.c.l.b16 %v333
      %v338 = vpack.c.b16 %v337, %v336
      %v340 = vsel %vm242, %v331, 0
      %vm342 = vcmask 1044480
      %v344 = vsel %vm342, %v338, 0
      %346 = vmatprep.subr.bf16.mxu0 0
      %347 = vmatpush1.bf16.msra.mxu0 0
      %348 = vmatprep.subr.bf16.mxu0 0
      %349 = vmatpush1.bf16.msra.mxu0 0
      %350 = vmatprep.subr.bf16.mxu0 0
      %351 = vmatpush1.bf16.msra.mxu0 0
      %352 = vmatprep.subr.bf16.mxu0 0
      %353 = vmatpush1.bf16.msra.mxu0 0
      %354 = vmatprep.subr.bf16.mxu0 0
      %355 = vmatpush1.bf16.msra.mxu0 0
      %356 = vmatprep.subr.bf16.mxu0 0
      %357 = vmatpush1.bf16.msra.mxu0 0
      %358 = vmatprep.subr.bf16.mxu0 0
      %359 = vmatpush1.bf16.msra.mxu0 0
      %360 = vmatprep.subr.bf16.mxu0 0
      %361 = vmatpush1.bf16.msra.mxu0 %v344
      %362 = vmatprep.subr.bf16.mxu0 0
      %363 = vmatpush2.bf16.msra.mxu0 0
      %364 = vmatprep.subr.bf16.mxu0 0
      %365 = vmatpush2.bf16.msra.mxu0 0
      %366 = vmatprep.subr.bf16.mxu0 0
      %367 = vmatpush2.bf16.msra.mxu0 0
      %368 = vmatprep.subr.bf16.mxu0 0
      %369 = vmatpush2.bf16.msra.mxu0 0
      %370 = vmatprep.subr.bf16.mxu0 0
      %371 = vmatpush2.bf16.msra.mxu0 0
      %372 = vmatprep.subr.bf16.mxu0 0
      %373 = vmatpush2.bf16.msra.mxu0 0
      %374 = vmatprep.subr.bf16.mxu0 0
      %375 = vmatpush2.bf16.msra.mxu0 0
      %376 = vmatprep.subr.bf16.mxu0 0
      %377 = vmatpush2.bf16.msra.mxu0 0
      %378 = vmatprep.mubr.bf16.mxu0 0
      %379 = vmatmul.mubr.bf16.gmra.mxu0 %v340
      %v380 = vpop.f32.mrf.mxu0
      %v381 = vadd.f32 0.0, %v380
      %v382 = vpop.f32.mrf.mxu0
      %v383 = vpop.f32.mrf.mxu0
      %v384 = vpop.f32.mrf.mxu0
      %385 = vdwg.mxu0
      %387 = vset.pattern.permute.xlu0 0
      %388 = vperm.xlu0 %387, %v329
      %v389 = vpop.permute.xlu0 %388
      %v391 = vmul.f32 %v381, %v389
      %v392 = vpack.c.bf16 %v391, %v391
      %v393 = vld [vmem:[#allocation10] sm:$0xf]
      %v394 = vld [vmem:[#allocation10 + $0x4] sm:$0xf]
      %v395 = vld [vmem:[#allocation10 + $0x8] sm:$0xf]
      %v396 = vld [vmem:[#allocation10 + $0xc] sm:$0xf]
      %v397 = vld [vmem:[%s4] sm:$0x1]
      %v399 = vlaneseq
      %v400 = vshrl.u32 %v399, 7
      %v401 = vsub.s32 0, %v400
      %v402 = vrot.slane %v397, %v401
      %v408 = vunpack.c.l.b16 %v393
      %v409 = vunpack.c.l.b16 %v394
      %v410 = vunpack.c.l.b16 %v395
      %v411 = vunpack.c.l.b16 %v396
      %v412 = vpack.c.b16 %v409, %v408
      %v413 = vpack.c.b16 %v411, %v410
      %vm416 = vcmask 261120
      %v418 = vsel %vm416, %v392, 0
      %420 = vmatprep.subr.bf16.mxu0 0
      %421 = vmatpush1.bf16.msra.mxu0 0
      %422 = vmatprep.subr.bf16.mxu0 0
      %423 = vmatpush1.bf16.msra.mxu0 0
      %424 = vmatprep.subr.bf16.mxu0 0
      %425 = vmatpush1.bf16.msra.mxu0 0
      %426 = vmatprep.subr.bf16.mxu0 0
      %427 = vmatpush1.bf16.msra.mxu0 0
      %428 = vmatprep.subr.bf16.mxu0 0
      %429 = vmatpush1.bf16.msra.mxu0 0
      %430 = vmatprep.subr.bf16.mxu0 0
      %431 = vmatpush1.bf16.msra.mxu0 0
      %432 = vmatprep.subr.bf16.mxu0 0
      %433 = vmatpush1.bf16.msra.mxu0 %v413
      %434 = vmatprep.subr.bf16.mxu0 0
      %435 = vmatpush1.bf16.msra.mxu0 %v412
      %436 = vmatprep.subr.bf16.mxu0 0
      %437 = vmatpush2.bf16.msra.mxu0 0
      %438 = vmatprep.subr.bf16.mxu0 0
      %439 = vmatpush2.bf16.msra.mxu0 0
      %440 = vmatprep.subr.bf16.mxu0 0
      %441 = vmatpush2.bf16.msra.mxu0 0
      %442 = vmatprep.subr.bf16.mxu0 0
      %443 = vmatpush2.bf16.msra.mxu0 0
      %444 = vmatprep.subr.bf16.mxu0 0
      %445 = vmatpush2.bf16.msra.mxu0 0
      %446 = vmatprep.subr.bf16.mxu0 0
      %447 = vmatpush2.bf16.msra.mxu0 0
      %448 = vmatprep.subr.bf16.mxu0 0
      %449 = vmatpush2.bf16.msra.mxu0 0
      %450 = vmatprep.subr.bf16.mxu0 0
      %451 = vmatpush2.bf16.msra.mxu0 0
      %452 = vmatprep.mubr.bf16.mxu0 0
      %453 = vmatmul.mubr.bf16.gmra.mxu0 %v418
      %v454 = vpop.f32.mrf.mxu0
      %v455 = vadd.f32 %v402, %v454
      %v456 = vpop.f32.mrf.mxu0
      %v457 = vpop.f32.mrf.mxu0
      %v458 = vpop.f32.mrf.mxu0
      %459 = vdwg.mxu0
      %v460 = vmax.f32 %v455, 0.0
      %v461 = vpack.c.bf16 %v460, %v460
      %v462 = vld [vmem:[#allocation12] sm:$0xf]
      %v463 = vld [vmem:[#allocation12 + $0x4] sm:$0xf]
      %v464 = vld [vmem:[#allocation12 + $0x8] sm:$0xf]
      %v465 = vld [vmem:[#allocation12 + $0xc] sm:$0xf]
      %v466 = vld [vmem:[#allocation12 + $0x10] sm:$0xf]
      %v467 = vld [vmem:[#allocation12 + $0x14] sm:$0xf]
      %v468 = vld [vmem:[#allocation12 + $0x18] sm:$0xf]
      %v469 = vld [vmem:[#allocation12 + $0x1c] sm:$0xf]
      %v470 = vld [vmem:[%s6] sm:$0x1]
      %v472 = vlaneseq
      %v473 = vshrl.u32 %v472, 7
      %v474 = vsub.s32 0, %v473
      %v475 = vrot.slane %v470, %v474
      %v485 = vunpack.c.l.b16 %v462
      %v486 = vunpack.c.l.b16 %v463
      %v487 = vunpack.c.l.b16 %v464
      %v488 = vunpack.c.l.b16 %v465
      %v489 = vunpack.c.l.b16 %v466
      %v490 = vunpack.c.l.b16 %v467
      %v491 = vunpack.c.l.b16 %v468
      %v492 = vunpack.c.l.b16 %v469
      %v493 = vpack.c.b16 %v486, %v485
      %v494 = vpack.c.b16 %v488, %v487
      %v495 = vpack.c.b16 %v490, %v489
      %v496 = vpack.c.b16 %v492, %v491
      %vm501 = vcmask 523264
      %v503 = vsel %vm501, %v461, 0
      %505 = vmatprep.subr.bf16.mxu0 0
      %506 = vmatpush1.bf16.msra.mxu0 0
      %507 = vmatprep.subr.bf16.mxu0 0
      %508 = vmatpush1.bf16.msra.mxu0 0
      %509 = vmatprep.subr.bf16.mxu0 0
      %510 = vmatpush1.bf16.msra.mxu0 0
      %511 = vmatprep.subr.bf16.mxu0 0
      %512 = vmatpush1.bf16.msra.mxu0 0
      %513 = vmatprep.subr.bf16.mxu0 0
      %514 = vmatpush1.bf16.msra.mxu0 %v496
      %515 = vmatprep.subr.bf16.mxu0 0
      %516 = vmatpush1.bf16.msra.mxu0 %v495
      %517 = vmatprep.subr.bf16.mxu0 0
      %518 = vmatpush1.bf16.msra.mxu0 %v494
      %519 = vmatprep.subr.bf16.mxu0 0
      %520 = vmatpush1.bf16.msra.mxu0 %v493
      %521 = vmatprep.subr.bf16.mxu0 0
      %522 = vmatpush2.bf16.msra.mxu0 0
      %523 = vmatprep.subr.bf16.mxu0 0
      %524 = vmatpush2.bf16.msra.mxu0 0
      %525 = vmatprep.subr.bf16.mxu0 0
      %526 = vmatpush2.bf16.msra.mxu0 0
      %527 = vmatprep.subr.bf16.mxu0 0
      %528 = vmatpush2.bf16.msra.mxu0 0
      %529 = vmatprep.subr.bf16.mxu0 0
      %530 = vmatpush2.bf16.msra.mxu0 0
      %531 = vmatprep.subr.bf16.mxu0 0
      %532 = vmatpush2.bf16.msra.mxu0 0
      %533 = vmatprep.subr.bf16.mxu0 0
      %534 = vmatpush2.bf16.msra.mxu0 0
      %535 = vmatprep.subr.bf16.mxu0 0
      %536 = vmatpush2.bf16.msra.mxu0 0
      %537 = vmatprep.mubr.bf16.mxu0 0
      %538 = vmatmul.mubr.bf16.gmra.mxu0 %v503
      %v539 = vpop.f32.mrf.mxu0
      %v540 = vadd.f32 %v475, %v539
      %v541 = vpop.f32.mrf.mxu0
      %v542 = vpop.f32.mrf.mxu0
      %v543 = vpop.f32.mrf.mxu0
      %544 = vdwg.mxu0
      %545 = vst [vmem:[#allocation13] sm:$0xff] %v540
    $region57: #{tpu_custom_call.1} parent=1 // pred_fallthru
      _
    // Predicated region
    $region58: #{tpu_custom_call.1} parent=1 // pred_check
      _
    $region59: #{tpu_custom_call.1} parent=1 // pred_check_branch
      %547 = sbr.rel (0) target = $region61
    $region60: #{tpu_custom_call.1} parent=1 // pred_region
      %s549 = ssub.s32 128, 128
      %550 = vsyncadd [#allocation6], %s549
      %s552 = sshll.u32 [#allocation13], 4
      %s553 = int_to_ptr.vmem [resolvable:$true] %s552
      %555 = dma.vmem_to_hbm [thread:$0]  %s553, 128, %s7, [#allocation6]
    $region61: #{tpu_custom_call.1} parent=1 // pred_fallthru
      _
    // Predicated region
    $region62: #{tpu_custom_call.1} parent=1 // pred_check
      _
    $region63: #{tpu_custom_call.1} parent=1 // pred_check_branch
      %557 = sbr.rel (0) target = $region65
    $region64: #{tpu_custom_call.1} parent=1 // pred_region
      %558 = dma.done [#allocation6], 128
    $region65: #{tpu_custom_call.1} parent=1 // pred_fallthru
      _
    %559 = vsyncpa [#allocation5], 1
    %560 = vsyncpa [#allocation8], 1
    %561 = vsyncpa [#allocation11], 1
    %562 = vsyncpa [#allocation6], 1

// kernel: tpu_custom_call.1
$region0: #{tpu_custom_call.1}
  #allocation0 [shape = 'u32[]', space=smem, size = 0x4, offset = 0x4, fixed_abs, tag = 'smem constant byte address 0x4 - core index']
  #allocation1 [shape = 'u32[144,128]{1,0:T(1,128)}', space=vmem, size = 0x12000, scoped, tag = 'internal scratch']
  #allocation2 [shape = 'f32[8,10]{1,0:T(8,128)}', space=vmem, size = 0x1000, scoped, tag = 'scratch operand']
  #allocation3 [shape = 'f32[8,1]{1,0:T(8,128)}', space=vmem, size = 0x1000, scoped, tag = 'scratch operand']
  %s0 = inlined_call_operand.hbm [shape: s32[8,8], index: 0, kind: input, shape index: {}]
  %s1 = inlined_call_operand.hbm [shape: s32[8,8], index: 1, kind: input, shape index: {}]
  %s2 = inlined_call_operand.hbm [shape: bf16[10,32], index: 2, kind: input, shape index: {}]
  %s3 = inlined_call_operand.hbm [shape: bf16[32,64], index: 3, kind: input, shape index: {}]
  %s4 = inlined_call_operand.vmem [shape: f32[1,64], index: 4, kind: input, shape index: {}]
  %s5 = inlined_call_operand.hbm [shape: bf16[64,128], index: 5, kind: input, shape index: {}]
  %s6 = inlined_call_operand.vmem [shape: f32[1,128], index: 6, kind: input, shape index: {}]
  %s7 = inlined_call_operand.hbm [shape: f32[8,128], index: 7, kind: output, shape index: {}]
  %s8 = sld [smem:[#allocation0]]
  $region66: #{tpu_custom_call.1} parent=0
    _
  %s10 = ssub.s32 1, %s8
  %s11 = scalar_select 0, %s10, %s8
  $region1: #{tpu_custom_call.1} parent=0
    #allocation4 [shape = 'u8[4096]{0}', space=vmem, size = 0x1000, scoped, tag = 'input window, operand 0, single buffered']
    #allocation5 [shape = 's32[1]{0}', space=sflag, size = 0x4, scoped, tag = 'scoped memory for tpu_custom_call.1']
    #allocation6 [shape = 's32[1]{0}', space=sflag, size = 0x4, scoped, tag = 'scoped memory for tpu_custom_call.1']
    #allocation7 [shape = 'u8[4096]{0}', space=vmem, size = 0x1000, scoped, tag = 'input window, operand 1, single buffered']
    #allocation8 [shape = 's32[1]{0}', space=sflag, size = 0x4, scoped, tag = 'scoped memory for tpu_custom_call.1']
    #allocation9 [shape = 'u8[4096]{0}', space=vmem, size = 0x1000, scoped, tag = 'input window, operand 2, single buffered']
    #allocation10 [shape = 'u8[8192]{0}', space=vmem, size = 0x2000, scoped, tag = 'input window, operand 3, single buffered']
    #allocation11 [shape = 's32[1]{0}', space=sflag, size = 0x4, scoped, tag = 'scoped memory for tpu_custom_call.1']
    #allocation12 [shape = 'u8[16384]{0}', space=vmem, size = 0x4000, scoped, tag = 'input window, operand 5, single buffered']
    #allocation13 [shape = 'u8[4096]{0}', space=vmem, size = 0x1000, scoped, tag = 'output window, operand 0, single buffered']
    %12 = vsyncpa [#allocation5], 0
    %13 = vsyncpa [#allocation8], 0
    %14 = vsyncpa [#allocation11], 0
    %15 = vsyncpa [#allocation6], 0
    // Predicated region
    $region2: #{tpu_custom_call.1} parent=1 // pred_check
      _
    $region3: #{tpu_custom_call.1} parent=1 // pred_check_branch
      %17 = sbr.rel (0) target = $region5
    $region4: #{tpu_custom_call.1} parent=1 // pred_region
      %s19 = ssub.s32 128, 128
      %20 = vsyncadd [#allocation5], %s19
      %s22 = sshll.u32 [#allocation4], 4
      %s23 = int_to_ptr.vmem [resolvable:$true] %s22
      %25 = dma.hbm_to_vmem [thread:$0]  %s0, 128, %s23, [#allocation5]
    $region5: #{tpu_custom_call.1} parent=1 // pred_fallthru
      _
    // Predicated region
    $region6: #{tpu_custom_call.1} parent=1 // pred_check
      _
    $region7: #{tpu_custom_call.1} parent=1 // pred_check_branch
      %27 = sbr.rel (0) target = $region9
    $region8: #{tpu_custom_call.1} parent=1 // pred_region
      %s29 = ssub.s32 128, 128
      %30 = vsyncadd [#allocation8], %s29
      %s32 = sshll.u32 [#allocation7], 4
      %s33 = int_to_ptr.vmem [resolvable:$true] %s32
      %35 = dma.hbm_to_vmem [thread:$0]  %s1, 128, %s33, [#allocation8]
    $region9: #{tpu_custom_call.1} parent=1 // pred_fallthru
      _
    // Predicated region
    $region10: #{tpu_custom_call.1} parent=1 // pred_check
      _
    $region11: #{tpu_custom_call.1} parent=1 // pred_check_branch
      %37 = sbr.rel (0) target = $region13
    $region12: #{tpu_custom_call.1} parent=1 // pred_region
      %s39 = ssub.s32 128, 128
      %40 = vsyncadd [#allocation8], %s39
      %s41 = sshll.u32 [#allocation9], 4
      %s42 = int_to_ptr.vmem [resolvable:$true] %s41
      %47 = dma.hbm_to_vmem [thread:$0]  %s2, 128, %s42, [#allocation8], 64, 64, 4
    $region13: #{tpu_custom_call.1} parent=1 // pred_fallthru
      _
    // Predicated region
    $region14: #{tpu_custom_call.1} parent=1 // pred_check
      _
    $region15: #{tpu_custom_call.1} parent=1 // pred_check_branch
      %49 = sbr.rel (0) target = $region17
    $region16: #{tpu_custom_call.1} parent=1 // pred_region
      %s51 = ssub.s32 256, 256
      %52 = vsyncadd [#allocation11], %s51
      %s53 = sshll.u32 [#allocation10], 4
      %s54 = int_to_ptr.vmem [resolvable:$true] %s53
      %59 = dma.hbm_to_vmem [thread:$0]  %s3, 256, %s54, [#allocation11], 64, 64, 4
    $region17: #{tpu_custom_call.1} parent=1 // pred_fallthru
      _
    // Predicated region
    $region18: #{tpu_custom_call.1} parent=1 // pred_check
      _
    $region19: #{tpu_custom_call.1} parent=1 // pred_check_branch
      %61 = sbr.rel (0) target = $region21
    $region20: #{tpu_custom_call.1} parent=1 // pred_region
      _
    $region21: #{tpu_custom_call.1} parent=1 // pred_fallthru
      _
    // Predicated region
    $region22: #{tpu_custom_call.1} parent=1 // pred_check
      _
    $region23: #{tpu_custom_call.1} parent=1 // pred_check_branch
      %63 = sbr.rel (0) target = $region25
    $region24: #{tpu_custom_call.1} parent=1 // pred_region
      %s65 = ssub.s32 512, 512
      %66 = vsyncadd [#allocation11], %s65
      %s67 = sshll.u32 [#allocation12], 4
      %s68 = int_to_ptr.vmem [resolvable:$true] %s67
      %73 = dma.hbm_to_vmem [thread:$0]  %s5, 512, %s68, [#allocation11], 64, 64, 4
    $region25: #{tpu_custom_call.1} parent=1 // pred_fallthru
      _
    // Predicated region
    $region26: #{tpu_custom_call.1} parent=1 // pred_check
      _
    $region27: #{tpu_custom_call.1} parent=1 // pred_check_branch
      %75 = sbr.rel (0) target = $region29
    $region28: #{tpu_custom_call.1} parent=1 // pred_region
      _
    $region29: #{tpu_custom_call.1} parent=1 // pred_fallthru
      _
    // Predicated region
    $region30: #{tpu_custom_call.1} parent=1 // pred_check
      _
    $region31: #{tpu_custom_call.1} parent=1 // pred_check_branch
      %77 = sbr.rel (0) target = $region33
    $region32: #{tpu_custom_call.1} parent=1 // pred_region
      %78 = dma.done [#allocation5], 128
    $region33: #{tpu_custom_call.1} parent=1 // pred_fallthru
      _
    // Predicated region
    $region34: #{tpu_custom_call.1} parent=1 // pred_check
      _
    $region35: #{tpu_custom_call.1} parent=1 // pred_check_branch
      %80 = sbr.rel (0) target = $region37
    $region36: #{tpu_custom_call.1} parent=1 // pred_region
      %81 = dma.done [#allocation8], 128
    $region37: #{tpu_custom_call.1} parent=1 // pred_fallthru
      _
    // Predicated region
    $region38: #{tpu_custom_call.1} parent=1 // pred_check
      _
    $region39: #{tpu_custom_call.1} parent=1 // pred_check_branch
      %83 = sbr.rel (0) target = $region41
    $region40: #{tpu_custom_call.1} parent=1 // pred_region
      %84 = dma.done [#allocation8], 128
    $region41: #{tpu_custom_call.1} parent=1 // pred_fallthru
      _
    // Predicated region
    $region42: #{tpu_custom_call.1} parent=1 // pred_check
      _
    $region43: #{tpu_custom_call.1} parent=1 // pred_check_branch
      %86 = sbr.rel (0) target = $region45
    $region44: #{tpu_custom_call.1} parent=1 // pred_region
      %87 = dma.done [#allocation11], 256
    $region45: #{tpu_custom_call.1} parent=1 // pred_fallthru
      _
    // Predicated region
    $region46: #{tpu_custom_call.1} parent=1 // pred_check
      _
    $region47: #{tpu_custom_call.1} parent=1 // pred_check_branch
      %89 = sbr.rel (0) target = $region49
    $region48: #{tpu_custom_call.1} parent=1 // pred_region
      %90 = dma.done [#allocation11], 512
    $region49: #{tpu_custom_call.1} parent=1 // pred_fallthru
      _
    %p92 = scmp.eq.s32.totalorder 0, 0
    // Predicated region
    $region50: #{tpu_custom_call.1} parent=1 // pred_check
      %p93 = pneg %p92
    $region51: #{tpu_custom_call.1} parent=1 // pred_check_branch
      %95 = sbr.rel (%p93) target = $region53
    $region52: #{tpu_custom_call.1} parent=1 // pred_region
      %vm96 = vcmask 80896
      %97 = vst.msk [vmem:[#allocation2] sm:$0xff] %vm96, 0.0
      %vm98 = vcmask 7168
      %99 = vst.msk [vmem:[#allocation3] sm:$0xff] %vm98, 0.0
    $region53: #{tpu_custom_call.1} parent=1 // pred_fallthru
      _
    %v100 = vld [vmem:[#allocation4] sm:$0xff]
    %v101 = vld [vmem:[#allocation7] sm:$0xff]
    %v102 = vcvt.s32.f32 %v101
    %v103 = vld [vmem:[#allocation3] sm:$0xff]
    %vm104 = vcmask 64512
    %v105 = vsel %vm104, %v102, 0.0
    %106 = vadd.xlane.f32.xlu0 %v105
    %v107 = vpop.xlane.xlu0 %106
    %v108 = vadd.f32 %v103, %v107
    %vm109 = vcmask 7168
    %110 = vst.msk [vmem:[#allocation3] sm:$0xff] %vm109, %v108
    %v111 = vlaneseq
    %v112 = vand.u32 %v111, 127
    %v113 = vlaneseq
    %v114 = vshrl.u32 %v113, 7
    %v115 = vsub.s32 0, %v114
    %v116 = vrot.slane %v100, %v115
    %118 = vbcast.lane.b32.xlu0 %v116, 256
    %v119 = vpop.permute.xlu0 %118
    %v120 = vlaneseq
    %v121 = vshrl.u32 %v120, 7
    %v122 = vsub.s32 1, %v121
    %v123 = vrot.slane %v100, %v122
    %125 = vbcast.lane.b32.xlu0 %v123, 256
    %v126 = vpop.permute.xlu0 %125
    %v127 = vlaneseq
    %v128 = vshrl.u32 %v127, 7
    %v129 = vsub.s32 2, %v128
    %v130 = vrot.slane %v100, %v129
    %132 = vbcast.lane.b32.xlu0 %v130, 256
    %v133 = vpop.permute.xlu0 %132
    %v134 = vlaneseq
    %v135 = vshrl.u32 %v134, 7
    %v136 = vsub.s32 3, %v135
    %v137 = vrot.slane %v100, %v136
    %139 = vbcast.lane.b32.xlu0 %v137, 256
    %v140 = vpop.permute.xlu0 %139
    %v141 = vlaneseq
    %v142 = vshrl.u32 %v141, 7
    %v143 = vsub.s32 4, %v142
    %v144 = vrot.slane %v100, %v143
    %146 = vbcast.lane.b32.xlu0 %v144, 256
    %v147 = vpop.permute.xlu0 %146
    %v148 = vlaneseq
    %v149 = vshrl.u32 %v148, 7
    %v150 = vsub.s32 5, %v149
    %v151 = vrot.slane %v100, %v150
    %153 = vbcast.lane.b32.xlu0 %v151, 256
    %v154 = vpop.permute.xlu0 %153
    %v155 = vlaneseq
    %v156 = vshrl.u32 %v155, 7
    %v157 = vsub.s32 6, %v156
    %v158 = vrot.slane %v100, %v157
    %160 = vbcast.lane.b32.xlu0 %v158, 256
    %v161 = vpop.permute.xlu0 %160
    %v162 = vlaneseq
    %v163 = vshrl.u32 %v162, 7
    %v164 = vsub.s32 7, %v163
    %v165 = vrot.slane %v100, %v164
    %167 = vbcast.lane.b32.xlu0 %v165, 256
    %v168 = vpop.permute.xlu0 %167
    %vm169 = vcmp.eq.s32.totalorder %v119, %v112
    %vm170 = vcmp.eq.s32.totalorder %v126, %v112
    %vm171 = vcmp.eq.s32.totalorder %v133, %v112
    %vm172 = vcmp.eq.s32.totalorder %v140, %v112
    %vm173 = vcmp.eq.s32.totalorder %v147, %v112
    %vm174 = vcmp.eq.s32.totalorder %v154, %v112
    %vm175 = vcmp.eq.s32.totalorder %v161, %v112
    %vm176 = vcmp.eq.s32.totalorder %v168, %v112
    %v177 = vlaneseq
    %v178 = vshrl.u32 %v177, 7
    %v179 = vsub.s32 0, %v178
    %v180 = vrot.slane %v102, %v179
    %182 = vbcast.lane.b32.xlu0 %v180, 256
    %v183 = vpop.permute.xlu0 %182
    %v184 = vlaneseq
    %v185 = vshrl.u32 %v184, 7
    %v186 = vsub.s32 1, %v185
    %v187 = vrot.slane %v102, %v186
    %189 = vbcast.lane.b32.xlu0 %v187, 256
    %v190 = vpop.permute.xlu0 %189
    %v191 = vlaneseq
    %v192 = vshrl.u32 %v191, 7
    %v193 = vsub.s32 2, %v192
    %v194 = vrot.slane %v102, %v193
    %196 = vbcast.lane.b32.xlu0 %v194, 256
    %v197 = vpop.permute.xlu0 %196
    %v198 = vlaneseq
    %v199 = vshrl.u32 %v198, 7
    %v200 = vsub.s32 3, %v199
    %v201 = vrot.slane %v102, %v200
    %203 = vbcast.lane.b32.xlu0 %v201, 256
    %v204 = vpop.permute.xlu0 %203
    %v205 = vlaneseq
    %v206 = vshrl.u32 %v205, 7
    %v207 = vsub.s32 4, %v206
    %v208 = vrot.slane %v102, %v207
    %210 = vbcast.lane.b32.xlu0 %v208, 256
    %v211 = vpop.permute.xlu0 %210
    %v212 = vlaneseq
    %v213 = vshrl.u32 %v212, 7
    %v214 = vsub.s32 5, %v213
    %v215 = vrot.slane %v102, %v214
    %217 = vbcast.lane.b32.xlu0 %v215, 256
    %v218 = vpop.permute.xlu0 %217
    %v219 = vlaneseq
    %v220 = vshrl.u32 %v219, 7
    %v221 = vsub.s32 6, %v220
    %v222 = vrot.slane %v102, %v221
    %224 = vbcast.lane.b32.xlu0 %v222, 256
    %v225 = vpop.permute.xlu0 %224
    %v226 = vlaneseq
    %v227 = vshrl.u32 %v226, 7
    %v228 = vsub.s32 7, %v227
    %v229 = vrot.slane %v102, %v228
    %231 = vbcast.lane.b32.xlu0 %v229, 256
    %v232 = vpop.permute.xlu0 %231
    %v233 = vsel %vm169, %v183, 0.0
    %v234 = vsel %vm170, %v190, 0.0
    %v235 = vsel %vm171, %v197, 0.0
    %v236 = vsel %vm172, %v204, 0.0
    %v237 = vsel %vm173, %v211, 0.0
    %v238 = vsel %vm174, %v218, 0.0
    %v239 = vsel %vm175, %v225, 0.0
    %v240 = vsel %vm176, %v232, 0.0
    %v241 = vld [vmem:[#allocation2] sm:$0xff]
    %vm242 = vcmask 80896
    %v243 = vsel %vm242, %v233, 0.0
    %v244 = vrot.slane %v243, 4
    %v245 = vadd.f32 %v243, %v244
    %v246 = vrot.slane %v245, 2
    %v247 = vadd.f32 %v245, %v246
    %v248 = vrot.slane %v247, 1
    %v249 = vadd.f32 %v247, %v248
    %v250 = vsel %vm242, %v234, 0.0
    %v251 = vrot.slane %v250, 4
    %v252 = vadd.f32 %v250, %v251
    %v253 = vrot.slane %v252, 2
    %v254 = vadd.f32 %v252, %v253
    %v255 = vrot.slane %v254, 1
    %v256 = vadd.f32 %v254, %v255
    %v257 = vsel %vm242, %v235, 0.0
    %v258 = vrot.slane %v257, 4
    %v259 = vadd.f32 %v257, %v258
    %v260 = vrot.slane %v259, 2
    %v261 = vadd.f32 %v259, %v260
    %v262 = vrot.slane %v261, 1
    %v263 = vadd.f32 %v261, %v262
    %v264 = vsel %vm242, %v236, 0.0
    %v265 = vrot.slane %v264, 4
    %v266 = vadd.f32 %v264, %v265
    %v267 = vrot.slane %v266, 2
    %v268 = vadd.f32 %v266, %v267
    %v269 = vrot.slane %v268, 1
    %v270 = vadd.f32 %v268, %v269
    %v271 = vsel %vm242, %v237, 0.0
    %v272 = vrot.slane %v271, 4
    %v273 = vadd.f32 %v271, %v272
    %v274 = vrot.slane %v273, 2
    %v275 = vadd.f32 %v273, %v274
    %v276 = vrot.slane %v275, 1
    %v277 = vadd.f32 %v275, %v276
    %v278 = vsel %vm242, %v238, 0.0
    %v279 = vrot.slane %v278, 4
    %v280 = vadd.f32 %v278, %v279
    %v281 = vrot.slane %v280, 2
    %v282 = vadd.f32 %v280, %v281
    %v283 = vrot.slane %v282, 1
    %v284 = vadd.f32 %v282, %v283
    %v285 = vsel %vm242, %v239, 0.0
    %v286 = vrot.slane %v285, 4
    %v287 = vadd.f32 %v285, %v286
    %v288 = vrot.slane %v287, 2
    %v289 = vadd.f32 %v287, %v288
    %v290 = vrot.slane %v289, 1
    %v291 = vadd.f32 %v289, %v290
    %v292 = vsel %vm242, %v240, 0.0
    %v293 = vrot.slane %v292, 4
    %v294 = vadd.f32 %v292, %v293
    %v295 = vrot.slane %v294, 2
    %v296 = vadd.f32 %v294, %v295
    %v297 = vrot.slane %v296, 1
    %v298 = vadd.f32 %v296, %v297
    %vm307 = vcmask 1041409
    %v308 = vsel %vm307, %v256, %v249
    %vm309 = vcmask 1042434
    %v310 = vsel %vm309, %v263, %v308
    %vm311 = vcmask 1043459
    %v312 = vsel %vm311, %v270, %v310
    %vm313 = vcmask 1044484
    %v314 = vsel %vm313, %v277, %v312
    %vm315 = vcmask 1045509
    %v316 = vsel %vm315, %v284, %v314
    %vm317 = vcmask 1046534
    %v318 = vsel %vm317, %v291, %v316
    %vm319 = vcmask 1047559
    %v320 = vsel %vm319, %v298, %v318
    %v322 = vadd.f32 %v241, %v320
    %323 = vst.msk [vmem:[#allocation2] sm:$0xff] %vm242, %v322
    // Predicated region
    $region54: #{tpu_custom_call.1} parent=1 // pred_check
      %p324 = pneg %p92
    $region55: #{tpu_custom_call.1} parent=1 // pred_check_branch
      %326 = sbr.rel (%p324) target = $region57
    $region56: #{tpu_custom_call.1} parent=1 // pred_region
      %v327 = vld [vmem:[#allocation3] sm:$0xff]
      %v328 = vmax.f32 %v327, 1.0
      %v329 = vrcp.pop %v328
      %v330 = vld [vmem:[#allocation2] sm:$0xff]
      %v331 = vpack.c.bf16 %v330, %v330
      %v332 = vld [vmem:[#allocation9] sm:$0xf]
      %v333 = vld [vmem:[#allocation9 + $0x4] sm:$0x1]
      %v336 = vunpack.c.l.b16 %v332
      %v337 = vunpack.c.l.b16 %v333
      %v338 = vpack.c.b16 %v337, %v336
      %v340 = vsel %vm242, %v331, 0
      %vm342 = vcmask 1044480
      %v344 = vsel %vm342, %v338, 0
      %346 = vmatprep.subr.bf16.mxu0 0
      %347 = vmatpush1.bf16.msra.mxu0 0
      %348 = vmatprep.subr.bf16.mxu0 0
      %349 = vmatpush1.bf16.msra.mxu0 0
      %350 = vmatprep.subr.bf16.mxu0 0
      %351 = vmatpush1.bf16.msra.mxu0 0
      %352 = vmatprep.subr.bf16.mxu0 0
      %353 = vmatpush1.bf16.msra.mxu0 0
      %354 = vmatprep.subr.bf16.mxu0 0
      %355 = vmatpush1.bf16.msra.mxu0 0
      %356 = vmatprep.subr.bf16.mxu0 0
      %357 = vmatpush1.bf16.msra.mxu0 0
      %358 = vmatprep.subr.bf16.mxu0 0
      %359 = vmatpush1.bf16.msra.mxu0 0
      %360 = vmatprep.subr.bf16.mxu0 0
      %361 = vmatpush1.bf16.msra.mxu0 %v344
      %362 = vmatprep.subr.bf16.mxu0 0
      %363 = vmatpush2.bf16.msra.mxu0 0
      %364 = vmatprep.subr.bf16.mxu0 0
      %365 = vmatpush2.bf16.msra.mxu0 0
      %366 = vmatprep.subr.bf16.mxu0 0
      %367 = vmatpush2.bf16.msra.mxu0 0
      %368 = vmatprep.subr.bf16.mxu0 0
      %369 = vmatpush2.bf16.msra.mxu0 0
      %370 = vmatprep.subr.bf16.mxu0 0
      %371 = vmatpush2.bf16.msra.mxu0 0
      %372 = vmatprep.subr.bf16.mxu0 0
      %373 = vmatpush2.bf16.msra.mxu0 0
      %374 = vmatprep.subr.bf16.mxu0 0
      %375 = vmatpush2.bf16.msra.mxu0 0
      %376 = vmatprep.subr.bf16.mxu0 0
      %377 = vmatpush2.bf16.msra.mxu0 0
      %378 = vmatprep.mubr.bf16.mxu0 0
      %379 = vmatmul.mubr.bf16.gmra.mxu0 %v340
      %v380 = vpop.f32.mrf.mxu0
      %v381 = vadd.f32 0.0, %v380
      %v382 = vpop.f32.mrf.mxu0
      %v383 = vpop.f32.mrf.mxu0
      %v384 = vpop.f32.mrf.mxu0
      %385 = vdwg.mxu0
      %387 = vset.pattern.permute.xlu0 0
      %388 = vperm.xlu0 %387, %v329
      %v389 = vpop.permute.xlu0 %388
      %v391 = vmul.f32 %v381, %v389
      %v392 = vpack.c.bf16 %v391, %v391
      %v393 = vld [vmem:[#allocation10] sm:$0xf]
      %v394 = vld [vmem:[#allocation10 + $0x4] sm:$0xf]
      %v395 = vld [vmem:[#allocation10 + $0x8] sm:$0xf]
      %v396 = vld [vmem:[#allocation10 + $0xc] sm:$0xf]
      %v397 = vld [vmem:[%s4] sm:$0x1]
      %v399 = vlaneseq
      %v400 = vshrl.u32 %v399, 7
      %v401 = vsub.s32 0, %v400
      %v402 = vrot.slane %v397, %v401
      %v408 = vunpack.c.l.b16 %v393
      %v409 = vunpack.c.l.b16 %v394
      %v410 = vunpack.c.l.b16 %v395
      %v411 = vunpack.c.l.b16 %v396
      %v412 = vpack.c.b16 %v409, %v408
      %v413 = vpack.c.b16 %v411, %v410
      %vm416 = vcmask 261120
      %v418 = vsel %vm416, %v392, 0
      %420 = vmatprep.subr.bf16.mxu0 0
      %421 = vmatpush1.bf16.msra.mxu0 0
      %422 = vmatprep.subr.bf16.mxu0 0
      %423 = vmatpush1.bf16.msra.mxu0 0
      %424 = vmatprep.subr.bf16.mxu0 0
      %425 = vmatpush1.bf16.msra.mxu0 0
      %426 = vmatprep.subr.bf16.mxu0 0
      %427 = vmatpush1.bf16.msra.mxu0 0
      %428 = vmatprep.subr.bf16.mxu0 0
      %429 = vmatpush1.bf16.msra.mxu0 0
      %430 = vmatprep.subr.bf16.mxu0 0
      %431 = vmatpush1.bf16.msra.mxu0 0
      %432 = vmatprep.subr.bf16.mxu0 0
      %433 = vmatpush1.bf16.msra.mxu0 %v413
      %434 = vmatprep.subr.bf16.mxu0 0
      %435 = vmatpush1.bf16.msra.mxu0 %v412
      %436 = vmatprep.subr.bf16.mxu0 0
      %437 = vmatpush2.bf16.msra.mxu0 0
      %438 = vmatprep.subr.bf16.mxu0 0
      %439 = vmatpush2.bf16.msra.mxu0 0
      %440 = vmatprep.subr.bf16.mxu0 0
      %441 = vmatpush2.bf16.msra.mxu0 0
      %442 = vmatprep.subr.bf16.mxu0 0
      %443 = vmatpush2.bf16.msra.mxu0 0
      %444 = vmatprep.subr.bf16.mxu0 0
      %445 = vmatpush2.bf16.msra.mxu0 0
      %446 = vmatprep.subr.bf16.mxu0 0
      %447 = vmatpush2.bf16.msra.mxu0 0
      %448 = vmatprep.subr.bf16.mxu0 0
      %449 = vmatpush2.bf16.msra.mxu0 0
      %450 = vmatprep.subr.bf16.mxu0 0
      %451 = vmatpush2.bf16.msra.mxu0 0
      %452 = vmatprep.mubr.bf16.mxu0 0
      %453 = vmatmul.mubr.bf16.gmra.mxu0 %v418
      %v454 = vpop.f32.mrf.mxu0
      %v455 = vadd.f32 %v402, %v454
      %v456 = vpop.f32.mrf.mxu0
      %v457 = vpop.f32.mrf.mxu0
      %v458 = vpop.f32.mrf.mxu0
      %459 = vdwg.mxu0
      %v460 = vmax.f32 %v455, 0.0
      %v461 = vpack.c.bf16 %v460, %v460
      %v462 = vld [vmem:[#allocation12] sm:$0xf]
      %v463 = vld [vmem:[#allocation12 + $0x4] sm:$0xf]
      %v464 = vld [vmem:[#allocation12 + $0x8] sm:$0xf]
      %v465 = vld [vmem:[#allocation12 + $0xc] sm:$0xf]
      %v466 = vld [vmem:[#allocation12 + $0x10] sm:$0xf]
      %v467 = vld [vmem:[#allocation12 + $0x14] sm:$0xf]
      %v468 = vld [vmem:[#allocation12 + $0x18] sm:$0xf]
      %v469 = vld [vmem:[#allocation12 + $0x1c] sm:$0xf]
      %v470 = vld [vmem:[%s6] sm:$0x1]
      %v472 = vlaneseq
      %v473 = vshrl.u32 %v472, 7
      %v474 = vsub.s32 0, %v473
      %v475 = vrot.slane %v470, %v474
      %v485 = vunpack.c.l.b16 %v462
      %v486 = vunpack.c.l.b16 %v463
      %v487 = vunpack.c.l.b16 %v464
      %v488 = vunpack.c.l.b16 %v465
      %v489 = vunpack.c.l.b16 %v466
      %v490 = vunpack.c.l.b16 %v467
      %v491 = vunpack.c.l.b16 %v468
      %v492 = vunpack.c.l.b16 %v469
      %v493 = vpack.c.b16 %v486, %v485
      %v494 = vpack.c.b16 %v488, %v487
      %v495 = vpack.c.b16 %v490, %v489
      %v496 = vpack.c.b16 %v492, %v491
      %vm501 = vcmask 523264
      %v503 = vsel %vm501, %v461, 0
      %505 = vmatprep.subr.bf16.mxu0 0
      %506 = vmatpush1.bf16.msra.mxu0 0
      %507 = vmatprep.subr.bf16.mxu0 0
      %508 = vmatpush1.bf16.msra.mxu0 0
      %509 = vmatprep.subr.bf16.mxu0 0
      %510 = vmatpush1.bf16.msra.mxu0 0
      %511 = vmatprep.subr.bf16.mxu0 0
      %512 = vmatpush1.bf16.msra.mxu0 0
      %513 = vmatprep.subr.bf16.mxu0 0
      %514 = vmatpush1.bf16.msra.mxu0 %v496
      %515 = vmatprep.subr.bf16.mxu0 0
      %516 = vmatpush1.bf16.msra.mxu0 %v495
      %517 = vmatprep.subr.bf16.mxu0 0
      %518 = vmatpush1.bf16.msra.mxu0 %v494
      %519 = vmatprep.subr.bf16.mxu0 0
      %520 = vmatpush1.bf16.msra.mxu0 %v493
      %521 = vmatprep.subr.bf16.mxu0 0
      %522 = vmatpush2.bf16.msra.mxu0 0
      %523 = vmatprep.subr.bf16.mxu0 0
      %524 = vmatpush2.bf16.msra.mxu0 0
      %525 = vmatprep.subr.bf16.mxu0 0
      %526 = vmatpush2.bf16.msra.mxu0 0
      %527 = vmatprep.subr.bf16.mxu0 0
      %528 = vmatpush2.bf16.msra.mxu0 0
      %529 = vmatprep.subr.bf16.mxu0 0
      %530 = vmatpush2.bf16.msra.mxu0 0
      %531 = vmatprep.subr.bf16.mxu0 0
      %532 = vmatpush2.bf16.msra.mxu0 0
      %533 = vmatprep.subr.bf16.mxu0 0
      %534 = vmatpush2.bf16.msra.mxu0 0
      %535 = vmatprep.subr.bf16.mxu0 0
      %536 = vmatpush2.bf16.msra.mxu0 0
      %537 = vmatprep.mubr.bf16.mxu0 0
      %538 = vmatmul.mubr.bf16.gmra.mxu0 %v503
      %v539 = vpop.f32.mrf.mxu0
      %v540 = vadd.f32 %v475, %v539
      %v541 = vpop.f32.mrf.mxu0
      %v542 = vpop.f32.mrf.mxu0
      %v543 = vpop.f32.mrf.mxu0
      %544 = vdwg.mxu0
      %545 = vst [vmem:[#allocation13] sm:$0xff] %v540
    $region57: #{tpu_custom_call.1} parent=1 // pred_fallthru
      _
    // Predicated region
    $region58: #{tpu_custom_call.1} parent=1 // pred_check
      _
    $region59: #{tpu_custom_call.1} parent=1 // pred_check_branch
      %547 = sbr.rel (0) target = $region61
    $region60: #{tpu_custom_call.1} parent=1 // pred_region
      %s549 = ssub.s32 128, 128
      %550 = vsyncadd [#allocation6], %s549
      %s552 = sshll.u32 [#allocation13], 4
      %s553 = int_to_ptr.vmem [resolvable:$true] %s552
      %555 = dma.vmem_to_hbm [thread:$0]  %s553, 128, %s7, [#allocation6]
    $region61: #{tpu_custom_call.1} parent=1 // pred_fallthru
      _
    // Predicated region
    $region62: #{tpu_custom_call.1} parent=1 // pred_check
      _
    $region63: #{tpu_custom_call.1} parent=1 // pred_check_branch
      %557 = sbr.rel (0) target = $region65
    $region64: #{tpu_custom_call.1} parent=1 // pred_region
      %558 = dma.done [#allocation6], 128
    $region65: #{tpu_custom_call.1} parent=1 // pred_fallthru
      _
    %559 = vsyncpa [#allocation5], 1
    %560 = vsyncpa [#allocation8], 1
    %561 = vsyncpa [#allocation11], 1
    %562 = vsyncpa [#allocation6], 1

</llo_original>
